<compile_context>
chip_gen: v6e
topology: v6e:2x2x1
jax: 0.10.0
libtpu: 0.0.40
codegen_flags: <defaults>
</compile_context>

<pallas_src>
import functools

import jax
import jax.numpy as jnp
from jax.experimental import pallas as pl
from jax.experimental.pallas import tpu as pltpu


def _pick_block(total, cap, align=1):
    """Largest divisor of `total` that is <= cap and a multiple of `align`."""
    if total <= cap:
        return total
    for d in range(cap, 0, -1):
        if total % d == 0 and d % align == 0:
            return d
    return total  # fall back to the full (exempt) dimension


# ---------------------------------------------------------------------------
# Pre-pass: fused gate matmul  U = x @ [wx|wf|wr|wc] + [0|bf|br|bc],
# with sigmoid applied to the f/r column bands.  Fully parallel over rows.
# ---------------------------------------------------------------------------
def _gates_kernel(x_ref, w_ref, b_ref, u_ref, *, n_out):
    u = jnp.dot(x_ref[...].astype(w_ref.dtype), w_ref[...],
                preferred_element_type=jnp.float32) + b_ref[...]
    cols = jax.lax.broadcasted_iota(jnp.int32, u.shape, dimension=1)
    is_gate = (cols >= n_out) & (cols < 3 * n_out)        # f and r bands
    u_ref[...] = jnp.where(is_gate, jax.nn.sigmoid(u), u).astype(u_ref.dtype)


def sru_gates(x2d, w_fused, b_fused, n_out):
    """x2d: (M, n_in) -> (M, 4*n_out) = [x~, sigmoid(f), sigmoid(r), con]."""
    M, n_in = x2d.shape
    N = w_fused.shape[1]
    m_blk = _pick_block(M, cap=512, align=8)
    return pl.pallas_call(
        functools.partial(_gates_kernel, n_out=n_out),
        out_shape=jax.ShapeDtypeStruct((M, N), jnp.float32),
        grid_spec=pltpu.PrefetchScalarGridSpec(
            num_scalar_prefetch=0,
            grid=(M // m_blk,),
            in_specs=[
                pl.BlockSpec((m_blk, n_in), lambda i: (i, 0)),
                pl.BlockSpec((n_in, N), lambda i: (0, 0)),
                pl.BlockSpec((1, N), lambda i: (0, 0)),
            ],
            out_specs=pl.BlockSpec((m_blk, N), lambda i: (i, 0)),
        ),
        compiler_params=pltpu.CompilerParams(
            dimension_semantics=("parallel",)),
    )(x2d, w_fused, b_fused)


# ---------------------------------------------------------------------------
# Sequential recurrence: time-blocked elementwise scan carrying c in VMEM.
# ---------------------------------------------------------------------------
def _scan_kernel(g_ref, c0_ref, ht_ref, ct_ref, c_scratch, *, n_out):
    t_blk = pl.program_id(0)

    @pl.when(t_blk == 0)
    def _():
        c_scratch[...] = c0_ref[...].astype(jnp.float32)

    T = g_ref.shape[0]

    def body(i, c):
        g = g_ref[i].astype(jnp.float32)        # (batch, 4*n_out)
        x_t = g[:, 0:n_out]
        f_t = g[:, n_out:2 * n_out]
        r_t = g[:, 2 * n_out:3 * n_out]
        con = g[:, 3 * n_out:4 * n_out]
        c_new = f_t * c + (1.0 - f_t) * x_t
        h_t = r_t * jnp.tanh(c_new) + (1.0 - r_t) * con
        # TODO(synk): ht's last dim (n_out) is < 128 lanes -> masked stores; a
        # lane-flattened (batch*n_out) output layout would need an in-kernel
        # relayout that is not worth it at these shapes.
        ht_ref[i] = h_t.astype(ht_ref.dtype)
        return c_new

    c_final = jax.lax.fori_loop(0, T, body, c_scratch[...], unroll=(T <= 16))
    c_scratch[...] = c_final

    @pl.when(t_blk == pl.num_programs(0) - 1)
    def _():
        ct_ref[...] = c_final.astype(ct_ref.dtype)


def sru_scan(gates, c0, n_out, out_dtype):
    """gates: (seq, batch, 4*n_out) pre-activated; c0: (batch, n_out)."""
    seq, batch, four_n = gates.shape
    t_blk = _pick_block(seq, cap=64, align=1)
    # TODO(synk): on v7x (2 TensorCores) add a parallel batch-block grid axis
    # when batch is large (>=16) to shard the independent per-row scans.
    ht, ct = pl.pallas_call(
        functools.partial(_scan_kernel, n_out=n_out),
        out_shape=(
            jax.ShapeDtypeStruct((seq, batch, n_out), out_dtype),
            jax.ShapeDtypeStruct((batch, n_out), out_dtype),
        ),
        grid_spec=pltpu.PrefetchScalarGridSpec(
            num_scalar_prefetch=0,
            grid=(seq // t_blk,),
            in_specs=[
                pl.BlockSpec((t_blk, batch, four_n), lambda t: (t, 0, 0)),
                pl.BlockSpec((batch, n_out), lambda t: (0, 0)),
            ],
            out_specs=(
                pl.BlockSpec((t_blk, batch, n_out), lambda t: (t, 0, 0)),
                pl.BlockSpec((batch, n_out), lambda t: (0, 0)),
            ),
            scratch_shapes=[pltpu.VMEM((batch, n_out), jnp.float32)],
        ),
        compiler_params=pltpu.CompilerParams(
            dimension_semantics=("arbitrary",)),
    )(gates, c0)
    return ht, ct


# ---------------------------------------------------------------------------
# Full module forward.
# ---------------------------------------------------------------------------
def sru_formula_cell_forward(xt, ct_forward, params, n_in, n_out, layer_numbers,
                             matmul_dtype=jnp.float32):
    """Mirrors SRU_Formula_Cell.forward (dropout p=0.0 -> identity).

    matmul_dtype: set to jnp.bfloat16 on v6e/v7x for MXU throughput (gating and
    accumulation stay float32); kept float32 here for a tight numerical check.
    """
    wx, wf, bf, wr, br, wc, bc, wcxl, bcxl = params

    # Fused gate weight / bias: columns [x~ | f | r | con].
    w_fused = jnp.concatenate([wx, wf, wr, wc], axis=1)                 # (n_in, 4*n_out)
    b_fused = jnp.concatenate([jnp.zeros_like(bf), bf, br, bc], axis=1)  # (1, 4*n_out)
    # Fold convert_x_layer (n_out -> n_in) into the fused weight for layers
    # whose input already has width n_out (exact linear fold).
    w_folded = wcxl @ w_fused                                            # (n_out, 4*n_out)
    b_folded = bcxl @ w_fused + b_fused                                  # (1, 4*n_out)

    x = xt
    ht, ct = xt, None
    for layer in range(layer_numbers):
        if x.shape[2] == n_out:
            w_l, b_l = w_folded, b_folded
        else:
            w_l, b_l = w_fused, b_fused
        seq, batch, d = x.shape
        gates = sru_gates(
            x.reshape(seq * batch, d).astype(matmul_dtype),
            w_l.astype(matmul_dtype),
            b_l.astype(jnp.float32),
            n_out,
        ).reshape(seq, batch, 4 * n_out)
        ht, ct = sru_scan(gates, ct_forward[layer], n_out, out_dtype=xt.dtype)
        x = ht
    # TODO(synk): self.convert_dim is re-initialized each step in PyTorch but
    # never applied to any tensor -> dead code, intentionally omitted.
    # dropout(p=0.0) is identity.
    return ht, ct


# ---------------------------------------------------------------------------
# Pure-JAX reference (faithful, unfused transcription of the PyTorch forward).
# ---------------------------------------------------------------------------
def _reference_forward(xt, ct_forward, params, n_in, n_out, layer_numbers):
    wx, wf, bf, wr, br, wc, bc, wcxl, bcxl = params
    ht, ct = xt, None
    for layer in range(layer_numbers):
        if xt.shape[2] == n_out:
            xt = jnp.einsum("sbo,oi->sbi", xt, wcxl) + bcxl
        c = ct_forward[layer]
        hs = []
        for i in range(xt.shape[0]):
            x = xt[i]
            x_t = x @ wx
            f = jax.nn.sigmoid(x @ wf + bf)
            r = jax.nn.sigmoid(x @ wr + br)
            c = f * c + (1.0 - f) * x_t
            con = x @ wc + bc
            h = r * jnp.tanh(c) + (1.0 - r) * con
            hs.append(h[None])
        ht = jnp.concatenate(hs, axis=0)
        ct = c
        xt = ht
    return ht, ct


if __name__ == "__main__":
    seq, batch = 8, 4
    n_in, n_out = 16, 32
    layer_numbers = 2  # exercises the folded convert_x_layer path too

    key = jax.random.PRNGKey(0)
    keys = jax.random.split(key, 12)

    wx = jax.random.normal(keys[0], (n_in, n_out), jnp.float32) * 0.1   # x_t (no bias)
    wf = jax.random.normal(keys[1], (n_in, n_out), jnp.float32) * 0.1   # ft
    bf = jax.random.normal(keys[2], (1, n_out), jnp.float32) * 0.1
    wr = jax.random.normal(keys[3], (n_in, n_out), jnp.float32) * 0.1   # rt
    br = jax.random.normal(keys[4], (1, n_out), jnp.float32) * 0.1
    wc = jax.random.normal(keys[5], (n_in, n_out), jnp.float32) * 0.1   # convert_x
    bc = jax.random.normal(keys[6], (1, n_out), jnp.float32) * 0.1
    wcxl = jax.random.normal(keys[7], (n_out, n_in), jnp.float32) * 0.1  # convert_x_layer
    bcxl = jax.random.normal(keys[8], (1, n_in), jnp.float32) * 0.1
    params = (wx, wf, bf, wr, br, wc, bc, wcxl, bcxl)

    xt = jax.random.normal(keys[9], (seq, batch, n_in), jnp.float32)
    ct_forward = jax.random.normal(keys[10], (layer_numbers, batch, n_out),
                                   jnp.float32)

    fwd = jax.jit(functools.partial(
        sru_formula_cell_forward, n_in=n_in, n_out=n_out,
        layer_numbers=layer_numbers))
    ht, ct = fwd(xt, ct_forward, params)
    jax.block_until_ready((ht, ct))

    ht_ref, ct_ref = _reference_forward(xt, ct_forward, params, n_in, n_out,
                                        layer_numbers)
    assert ht.shape == (seq, batch, n_out) and ct.shape == (batch, n_out)
    assert jnp.allclose(ht, ht_ref, atol=1e-4, rtol=1e-4), (
        float(jnp.max(jnp.abs(ht - ht_ref))))
    assert jnp.allclose(ct, ct_ref, atol=1e-4, rtol=1e-4), (
        float(jnp.max(jnp.abs(ct - ct_ref))))

    print("KERNEL_OK")
</pallas_src>

<mosaic_0001>
module attributes {stable_mosaic.version = 11 : i64} {
  func.func @_gates_kernel(%arg0: i32, %arg1: memref<32x32xf32, #tpu.memory_space<vmem>>, %arg2: memref<32x128xf32, #tpu.memory_space<vmem>>, %arg3: memref<1x128xf32, #tpu.memory_space<vmem>>, %arg4: memref<32x128xf32, #tpu.memory_space<vmem>>) attributes {dimension_semantics = [#tpu.dimension_semantics<parallel>], iteration_bounds = array<i64: 1>, scalar_prefetch = 0 : i64, scratch_operands = 0 : i64, tpu.core_type = #tpu.core_type<tc>, window_params = [{transform_indices = @transform_0, window_bounds = array<i64: 32, 32>}, {pipeline_mode = #tpu.pipeline_mode<synchronous>, transform_indices = @transform_1, window_bounds = array<i64: 32, 128>}, {pipeline_mode = #tpu.pipeline_mode<synchronous>, transform_indices = @transform_2, window_bounds = array<i64: 1, 128>}, {transform_indices = @transform_3, window_bounds = array<i64: 32, 128>}]} {
    %c0 = arith.constant 0 : index
    %c0_0 = arith.constant 0 : index
    %0 = vector.load %arg1[%c0, %c0_0] : memref<32x32xf32, #tpu.memory_space<vmem>>, vector<32x32xf32>
    %c0_1 = arith.constant 0 : index
    %c0_2 = arith.constant 0 : index
    %1 = vector.load %arg2[%c0_1, %c0_2] : memref<32x128xf32, #tpu.memory_space<vmem>>, vector<32x128xf32>
    %cst = arith.constant dense<0.000000e+00> : vector<32x128xf32>
    %2 = tpu.matmul %0, %1, %cst {dimension_numbers = #tpu.dot_dimension_numbers<[1], [0], [0], [1], [0, 0, 1, 1], [], []>} : vector<32x32xf32>, vector<32x128xf32>, vector<32x128xf32> -> vector<32x128xf32>
    %c0_3 = arith.constant 0 : index
    %c0_4 = arith.constant 0 : index
    %3 = vector.load %arg3[%c0_3, %c0_4] : memref<1x128xf32, #tpu.memory_space<vmem>>, vector<1x128xf32>
    %4 = vector.broadcast %3 : vector<1x128xf32> to vector<32x128xf32>
    %5 = arith.addf %2, %4 : vector<32x128xf32>
    %6 = tpu.iota {dimensions = array<i32: 1>} : vector<32x128xi32>
    %c32_i32 = arith.constant 32 : i32
    %7 = vector.broadcast %c32_i32 : i32 to vector<32x128xi32>
    %8 = arith.cmpi sge, %6, %7 : vector<32x128xi32>
    %c96_i32 = arith.constant 96 : i32
    %9 = vector.broadcast %c96_i32 : i32 to vector<32x128xi32>
    %10 = arith.cmpi slt, %6, %9 : vector<32x128xi32>
    %11 = arith.andi %8, %10 : vector<32x128xi1>
    %12 = arith.negf %5 : vector<32x128xf32>
    %13 = math.exp %12 : vector<32x128xf32>
    %cst_5 = arith.constant 1.000000e+00 : f32
    %14 = vector.broadcast %cst_5 : f32 to vector<32x128xf32>
    %15 = arith.addf %14, %13 : vector<32x128xf32>
    %16 = arith.divf %14, %15 : vector<32x128xf32>
    %17 = arith.select %11, %16, %5 : vector<32x128xi1>, vector<32x128xf32>
    %c0_6 = arith.constant 0 : index
    %c0_7 = arith.constant 0 : index
    %18 = vector.load %arg4[%c0_6, %c0_7] : memref<32x128xf32, #tpu.memory_space<vmem>>, vector<32x128xf32>
    tpu.vector_store %arg4[%c0_6, %c0_7], %17 {strides = array<i32>} : memref<32x128xf32, #tpu.memory_space<vmem>>, vector<32x128xf32>,
    return
  }
  func.func @transform_0(%arg0: i32) -> (i32, i32) {
    %c0_i32 = arith.constant 0 : i32
    %c0_i32_0 = arith.constant 0 : i32
    return %arg0, %c0_i32 : i32, i32
  }
  func.func @transform_1(%arg0: i32) -> (i32, i32) {
    %c0_i32 = arith.constant 0 : i32
    %c0_i32_0 = arith.constant 0 : i32
    %c0_i32_1 = arith.constant 0 : i32
    return %c0_i32, %c0_i32_0 : i32, i32
  }
  func.func @transform_2(%arg0: i32) -> (i32, i32) {
    %c0_i32 = arith.constant 0 : i32
    %c0_i32_0 = arith.constant 0 : i32
    %c0_i32_1 = arith.constant 0 : i32
    return %c0_i32, %c0_i32_0 : i32, i32
  }
  func.func @transform_3(%arg0: i32) -> (i32, i32) {
    %c0_i32 = arith.constant 0 : i32
    %c0_i32_0 = arith.constant 0 : i32
    return %arg0, %c0_i32 : i32, i32
  }
}

module attributes {stable_mosaic.version = 11 : i64} {
  func.func @_gates_kernel(%arg0: i32, %arg1: memref<32x16xf32, #tpu.memory_space<vmem>>, %arg2: memref<16x128xf32, #tpu.memory_space<vmem>>, %arg3: memref<1x128xf32, #tpu.memory_space<vmem>>, %arg4: memref<32x128xf32, #tpu.memory_space<vmem>>) attributes {dimension_semantics = [#tpu.dimension_semantics<parallel>], iteration_bounds = array<i64: 1>, scalar_prefetch = 0 : i64, scratch_operands = 0 : i64, tpu.core_type = #tpu.core_type<tc>, window_params = [{transform_indices = @transform_0, window_bounds = array<i64: 32, 16>}, {pipeline_mode = #tpu.pipeline_mode<synchronous>, transform_indices = @transform_1, window_bounds = array<i64: 16, 128>}, {pipeline_mode = #tpu.pipeline_mode<synchronous>, transform_indices = @transform_2, window_bounds = array<i64: 1, 128>}, {transform_indices = @transform_3, window_bounds = array<i64: 32, 128>}]} {
    %c0 = arith.constant 0 : index
    %c0_0 = arith.constant 0 : index
    %0 = vector.load %arg1[%c0, %c0_0] : memref<32x16xf32, #tpu.memory_space<vmem>>, vector<32x16xf32>
    %c0_1 = arith.constant 0 : index
    %c0_2 = arith.constant 0 : index
    %1 = vector.load %arg2[%c0_1, %c0_2] : memref<16x128xf32, #tpu.memory_space<vmem>>, vector<16x128xf32>
    %cst = arith.constant dense<0.000000e+00> : vector<32x128xf32>
    %2 = tpu.matmul %0, %1, %cst {dimension_numbers = #tpu.dot_dimension_numbers<[1], [0], [0], [1], [0, 0, 1, 1], [], []>} : vector<32x16xf32>, vector<16x128xf32>, vector<32x128xf32> -> vector<32x128xf32>
    %c0_3 = arith.constant 0 : index
    %c0_4 = arith.constant 0 : index
    %3 = vector.load %arg3[%c0_3, %c0_4] : memref<1x128xf32, #tpu.memory_space<vmem>>, vector<1x128xf32>
    %4 = vector.broadcast %3 : vector<1x128xf32> to vector<32x128xf32>
    %5 = arith.addf %2, %4 : vector<32x128xf32>
    %6 = tpu.iota {dimensions = array<i32: 1>} : vector<32x128xi32>
    %c32_i32 = arith.constant 32 : i32
    %7 = vector.broadcast %c32_i32 : i32 to vector<32x128xi32>
    %8 = arith.cmpi sge, %6, %7 : vector<32x128xi32>
    %c96_i32 = arith.constant 96 : i32
    %9 = vector.broadcast %c96_i32 : i32 to vector<32x128xi32>
    %10 = arith.cmpi slt, %6, %9 : vector<32x128xi32>
    %11 = arith.andi %8, %10 : vector<32x128xi1>
    %12 = arith.negf %5 : vector<32x128xf32>
    %13 = math.exp %12 : vector<32x128xf32>
    %cst_5 = arith.constant 1.000000e+00 : f32
    %14 = vector.broadcast %cst_5 : f32 to vector<32x128xf32>
    %15 = arith.addf %14, %13 : vector<32x128xf32>
    %16 = arith.divf %14, %15 : vector<32x128xf32>
    %17 = arith.select %11, %16, %5 : vector<32x128xi1>, vector<32x128xf32>
    %c0_6 = arith.constant 0 : index
    %c0_7 = arith.constant 0 : index
    %18 = vector.load %arg4[%c0_6, %c0_7] : memref<32x128xf32, #tpu.memory_space<vmem>>, vector<32x128xf32>
    tpu.vector_store %arg4[%c0_6, %c0_7], %17 {strides = array<i32>} : memref<32x128xf32, #tpu.memory_space<vmem>>, vector<32x128xf32>,
    return
  }
  func.func @transform_0(%arg0: i32) -> (i32, i32) {
    %c0_i32 = arith.constant 0 : i32
    %c0_i32_0 = arith.constant 0 : i32
    return %arg0, %c0_i32 : i32, i32
  }
  func.func @transform_1(%arg0: i32) -> (i32, i32) {
    %c0_i32 = arith.constant 0 : i32
    %c0_i32_0 = arith.constant 0 : i32
    %c0_i32_1 = arith.constant 0 : i32
    return %c0_i32, %c0_i32_0 : i32, i32
  }
  func.func @transform_2(%arg0: i32) -> (i32, i32) {
    %c0_i32 = arith.constant 0 : i32
    %c0_i32_0 = arith.constant 0 : i32
    %c0_i32_1 = arith.constant 0 : i32
    return %c0_i32, %c0_i32_0 : i32, i32
  }
  func.func @transform_3(%arg0: i32) -> (i32, i32) {
    %c0_i32 = arith.constant 0 : i32
    %c0_i32_0 = arith.constant 0 : i32
    return %arg0, %c0_i32 : i32, i32
  }
}

module attributes {stable_mosaic.version = 11 : i64} {
  func.func @_scan_kernel(%arg0: i32, %arg1: memref<8x4x128xf32, #tpu.memory_space<vmem>>, %arg2: memref<4x32xf32, #tpu.memory_space<vmem>>, %arg3: memref<8x4x32xf32, #tpu.memory_space<vmem>>, %arg4: memref<4x32xf32, #tpu.memory_space<vmem>>, %arg5: memref<4x32xf32, #tpu.memory_space<vmem>>) attributes {dimension_semantics = [#tpu.dimension_semantics<arbitrary>], iteration_bounds = array<i64: 1>, scalar_prefetch = 0 : i64, scratch_operands = 1 : i64, tpu.core_type = #tpu.core_type<tc>, window_params = [{transform_indices = @transform_0, window_bounds = array<i64: 8, 4, 128>}, {pipeline_mode = #tpu.pipeline_mode<synchronous>, transform_indices = @transform_1, window_bounds = array<i64: 4, 32>}, {transform_indices = @transform_2, window_bounds = array<i64: 8, 4, 32>}, {pipeline_mode = #tpu.pipeline_mode<synchronous>, transform_indices = @transform_3, window_bounds = array<i64: 4, 32>}]} {
    %c0_i32 = arith.constant 0 : i32
    %0 = arith.cmpi eq, %arg0, %c0_i32 : i32
    %1 = arith.extui %0 : i1 to i32
    %c0_i32_0 = arith.constant 0 : i32
    %2 = arith.cmpi ne, %1, %c0_i32_0 : i32
    scf.if %2 {
      %c0_54 = arith.constant 0 : index
      %c0_55 = arith.constant 0 : index
      %184 = vector.load %arg2[%c0_54, %c0_55] : memref<4x32xf32, #tpu.memory_space<vmem>>, vector<4x32xf32>
      %c0_56 = arith.constant 0 : index
      %c0_57 = arith.constant 0 : index
      %185 = vector.load %arg5[%c0_56, %c0_57] : memref<4x32xf32, #tpu.memory_space<vmem>>, vector<4x32xf32>
      tpu.vector_store %arg5[%c0_56, %c0_57], %184 {strides = array<i32>} : memref<4x32xf32, #tpu.memory_space<vmem>>, vector<4x32xf32>,
    } else {
    }
    %c0 = arith.constant 0 : index
    %c0_1 = arith.constant 0 : index
    %3 = vector.load %arg5[%c0, %c0_1] : memref<4x32xf32, #tpu.memory_space<vmem>>, vector<4x32xf32>
    %c0_i32_2 = arith.constant 0 : i32
    %4 = arith.index_cast %c0_i32_2 : i32 to index
    %c0_3 = arith.constant 0 : index
    %c0_4 = arith.constant 0 : index
    %5 = vector.load %arg1[%4, %c0_3, %c0_4] : memref<8x4x128xf32, #tpu.memory_space<vmem>>, vector<1x4x128xf32>
    %6 = vector.shape_cast %5 : vector<1x4x128xf32> to vector<4x128xf32>
    %7 = vector.extract_strided_slice %6 {offsets = [0, 0], sizes = [4, 32], strides = [1, 1]} : vector<4x128xf32> to vector<4x32xf32>
    %8 = vector.extract_strided_slice %6 {offsets = [0, 32], sizes = [4, 32], strides = [1, 1]} : vector<4x128xf32> to vector<4x32xf32>
    %9 = vector.extract_strided_slice %6 {offsets = [0, 64], sizes = [4, 32], strides = [1, 1]} : vector<4x128xf32> to vector<4x32xf32>
    %10 = vector.extract_strided_slice %6 {offsets = [0, 96], sizes = [4, 32], strides = [1, 1]} : vector<4x128xf32> to vector<4x32xf32>
    %11 = arith.mulf %8, %3 : vector<4x32xf32>
    %cst = arith.constant 1.000000e+00 : f32
    %12 = vector.broadcast %cst : f32 to vector<4x32xf32>
    %13 = arith.subf %12, %8 : vector<4x32xf32>
    %14 = arith.mulf %13, %7 : vector<4x32xf32>
    %15 = arith.addf %11, %14 : vector<4x32xf32>
    %16 = math.tanh %15 : vector<4x32xf32>
    %17 = arith.mulf %9, %16 : vector<4x32xf32>
    %cst_5 = arith.constant 1.000000e+00 : f32
    %18 = vector.broadcast %cst_5 : f32 to vector<4x32xf32>
    %19 = arith.subf %18, %9 : vector<4x32xf32>
    %20 = arith.mulf %19, %10 : vector<4x32xf32>
    %21 = arith.addf %17, %20 : vector<4x32xf32>
    %22 = arith.index_cast %c0_i32_2 : i32 to index
    %c0_6 = arith.constant 0 : index
    %c0_7 = arith.constant 0 : index
    %23 = vector.load %arg3[%22, %c0_6, %c0_7] : memref<8x4x32xf32, #tpu.memory_space<vmem>>, vector<1x4x32xf32>
    %24 = vector.shape_cast %23 : vector<1x4x32xf32> to vector<4x32xf32>
    %25 = vector.shape_cast %21 : vector<4x32xf32> to vector<1x4x32xf32>
    tpu.vector_store %arg3[%22, %c0_6, %c0_7], %25 {strides = array<i32>} : memref<8x4x32xf32, #tpu.memory_space<vmem>>, vector<1x4x32xf32>,
    %c1_i32 = arith.constant 1 : i32
    %26 = arith.index_cast %c1_i32 : i32 to index
    %c0_8 = arith.constant 0 : index
    %c0_9 = arith.constant 0 : index
    %27 = vector.load %arg1[%26, %c0_8, %c0_9] : memref<8x4x128xf32, #tpu.memory_space<vmem>>, vector<1x4x128xf32>
    %28 = vector.shape_cast %27 : vector<1x4x128xf32> to vector<4x128xf32>
    %29 = vector.extract_strided_slice %28 {offsets = [0, 0], sizes = [4, 32], strides = [1, 1]} : vector<4x128xf32> to vector<4x32xf32>
    %30 = vector.extract_strided_slice %28 {offsets = [0, 32], sizes = [4, 32], strides = [1, 1]} : vector<4x128xf32> to vector<4x32xf32>
    %31 = vector.extract_strided_slice %28 {offsets = [0, 64], sizes = [4, 32], strides = [1, 1]} : vector<4x128xf32> to vector<4x32xf32>
    %32 = vector.extract_strided_slice %28 {offsets = [0, 96], sizes = [4, 32], strides = [1, 1]} : vector<4x128xf32> to vector<4x32xf32>
    %33 = arith.mulf %30, %15 : vector<4x32xf32>
    %cst_10 = arith.constant 1.000000e+00 : f32
    %34 = vector.broadcast %cst_10 : f32 to vector<4x32xf32>
    %35 = arith.subf %34, %30 : vector<4x32xf32>
    %36 = arith.mulf %35, %29 : vector<4x32xf32>
    %37 = arith.addf %33, %36 : vector<4x32xf32>
    %38 = math.tanh %37 : vector<4x32xf32>
    %39 = arith.mulf %31, %38 : vector<4x32xf32>
    %cst_11 = arith.constant 1.000000e+00 : f32
    %40 = vector.broadcast %cst_11 : f32 to vector<4x32xf32>
    %41 = arith.subf %40, %31 : vector<4x32xf32>
    %42 = arith.mulf %41, %32 : vector<4x32xf32>
    %43 = arith.addf %39, %42 : vector<4x32xf32>
    %44 = arith.index_cast %c1_i32 : i32 to index
    %c0_12 = arith.constant 0 : index
    %c0_13 = arith.constant 0 : index
    %45 = vector.load %arg3[%44, %c0_12, %c0_13] : memref<8x4x32xf32, #tpu.memory_space<vmem>>, vector<1x4x32xf32>
    %46 = vector.shape_cast %45 : vector<1x4x32xf32> to vector<4x32xf32>
    %47 = vector.shape_cast %43 : vector<4x32xf32> to vector<1x4x32xf32>
    tpu.vector_store %arg3[%44, %c0_12, %c0_13], %47 {strides = array<i32>} : memref<8x4x32xf32, #tpu.memory_space<vmem>>, vector<1x4x32xf32>,
    %c2_i32 = arith.constant 2 : i32
    %48 = arith.index_cast %c2_i32 : i32 to index
    %c0_14 = arith.constant 0 : index
    %c0_15 = arith.constant 0 : index
    %49 = vector.load %arg1[%48, %c0_14, %c0_15] : memref<8x4x128xf32, #tpu.memory_space<vmem>>, vector<1x4x128xf32>
    %50 = vector.shape_cast %49 : vector<1x4x128xf32> to vector<4x128xf32>
    %51 = vector.extract_strided_slice %50 {offsets = [0, 0], sizes = [4, 32], strides = [1, 1]} : vector<4x128xf32> to vector<4x32xf32>
    %52 = vector.extract_strided_slice %50 {offsets = [0, 32], sizes = [4, 32], strides = [1, 1]} : vector<4x128xf32> to vector<4x32xf32>
    %53 = vector.extract_strided_slice %50 {offsets = [0, 64], sizes = [4, 32], strides = [1, 1]} : vector<4x128xf32> to vector<4x32xf32>
    %54 = vector.extract_strided_slice %50 {offsets = [0, 96], sizes = [4, 32], strides = [1, 1]} : vector<4x128xf32> to vector<4x32xf32>
    %55 = arith.mulf %52, %37 : vector<4x32xf32>
    %cst_16 = arith.constant 1.000000e+00 : f32
    %56 = vector.broadcast %cst_16 : f32 to vector<4x32xf32>
    %57 = arith.subf %56, %52 : vector<4x32xf32>
    %58 = arith.mulf %57, %51 : vector<4x32xf32>
    %59 = arith.addf %55, %58 : vector<4x32xf32>
    %60 = math.tanh %59 : vector<4x32xf32>
    %61 = arith.mulf %53, %60 : vector<4x32xf32>
    %cst_17 = arith.constant 1.000000e+00 : f32
    %62 = vector.broadcast %cst_17 : f32 to vector<4x32xf32>
    %63 = arith.subf %62, %53 : vector<4x32xf32>
    %64 = arith.mulf %63, %54 : vector<4x32xf32>
    %65 = arith.addf %61, %64 : vector<4x32xf32>
    %66 = arith.index_cast %c2_i32 : i32 to index
    %c0_18 = arith.constant 0 : index
    %c0_19 = arith.constant 0 : index
    %67 = vector.load %arg3[%66, %c0_18, %c0_19] : memref<8x4x32xf32, #tpu.memory_space<vmem>>, vector<1x4x32xf32>
    %68 = vector.shape_cast %67 : vector<1x4x32xf32> to vector<4x32xf32>
    %69 = vector.shape_cast %65 : vector<4x32xf32> to vector<1x4x32xf32>
    tpu.vector_store %arg3[%66, %c0_18, %c0_19], %69 {strides = array<i32>} : memref<8x4x32xf32, #tpu.memory_space<vmem>>, vector<1x4x32xf32>,
    %c3_i32 = arith.constant 3 : i32
    %70 = arith.index_cast %c3_i32 : i32 to index
    %c0_20 = arith.constant 0 : index
    %c0_21 = arith.constant 0 : index
    %71 = vector.load %arg1[%70, %c0_20, %c0_21] : memref<8x4x128xf32, #tpu.memory_space<vmem>>, vector<1x4x128xf32>
    %72 = vector.shape_cast %71 : vector<1x4x128xf32> to vector<4x128xf32>
    %73 = vector.extract_strided_slice %72 {offsets = [0, 0], sizes = [4, 32], strides = [1, 1]} : vector<4x128xf32> to vector<4x32xf32>
    %74 = vector.extract_strided_slice %72 {offsets = [0, 32], sizes = [4, 32], strides = [1, 1]} : vector<4x128xf32> to vector<4x32xf32>
    %75 = vector.extract_strided_slice %72 {offsets = [0, 64], sizes = [4, 32], strides = [1, 1]} : vector<4x128xf32> to vector<4x32xf32>
    %76 = vector.extract_strided_slice %72 {offsets = [0, 96], sizes = [4, 32], strides = [1, 1]} : vector<4x128xf32> to vector<4x32xf32>
    %77 = arith.mulf %74, %59 : vector<4x32xf32>
    %cst_22 = arith.constant 1.000000e+00 : f32
    %78 = vector.broadcast %cst_22 : f32 to vector<4x32xf32>
    %79 = arith.subf %78, %74 : vector<4x32xf32>
    %80 = arith.mulf %79, %73 : vector<4x32xf32>
    %81 = arith.addf %77, %80 : vector<4x32xf32>
    %82 = math.tanh %81 : vector<4x32xf32>
    %83 = arith.mulf %75, %82 : vector<4x32xf32>
    %cst_23 = arith.constant 1.000000e+00 : f32
    %84 = vector.broadcast %cst_23 : f32 to vector<4x32xf32>
    %85 = arith.subf %84, %75 : vector<4x32xf32>
    %86 = arith.mulf %85, %76 : vector<4x32xf32>
    %87 = arith.addf %83, %86 : vector<4x32xf32>
    %88 = arith.index_cast %c3_i32 : i32 to index
    %c0_24 = arith.constant 0 : index
    %c0_25 = arith.constant 0 : index
    %89 = vector.load %arg3[%88, %c0_24, %c0_25] : memref<8x4x32xf32, #tpu.memory_space<vmem>>, vector<1x4x32xf32>
    %90 = vector.shape_cast %89 : vector<1x4x32xf32> to vector<4x32xf32>
    %91 = vector.shape_cast %87 : vector<4x32xf32> to vector<1x4x32xf32>
    tpu.vector_store %arg3[%88, %c0_24, %c0_25], %91 {strides = array<i32>} : memref<8x4x32xf32, #tpu.memory_space<vmem>>, vector<1x4x32xf32>,
    %c4_i32 = arith.constant 4 : i32
    %92 = arith.index_cast %c4_i32 : i32 to index
    %c0_26 = arith.constant 0 : index
    %c0_27 = arith.constant 0 : index
    %93 = vector.load %arg1[%92, %c0_26, %c0_27] : memref<8x4x128xf32, #tpu.memory_space<vmem>>, vector<1x4x128xf32>
    %94 = vector.shape_cast %93 : vector<1x4x128xf32> to vector<4x128xf32>
    %95 = vector.extract_strided_slice %94 {offsets = [0, 0], sizes = [4, 32], strides = [1, 1]} : vector<4x128xf32> to vector<4x32xf32>
    %96 = vector.extract_strided_slice %94 {offsets = [0, 32], sizes = [4, 32], strides = [1, 1]} : vector<4x128xf32> to vector<4x32xf32>
    %97 = vector.extract_strided_slice %94 {offsets = [0, 64], sizes = [4, 32], strides = [1, 1]} : vector<4x128xf32> to vector<4x32xf32>
    %98 = vector.extract_strided_slice %94 {offsets = [0, 96], sizes = [4, 32], strides = [1, 1]} : vector<4x128xf32> to vector<4x32xf32>
    %99 = arith.mulf %96, %81 : vector<4x32xf32>
    %cst_28 = arith.constant 1.000000e+00 : f32
    %100 = vector.broadcast %cst_28 : f32 to vector<4x32xf32>
    %101 = arith.subf %100, %96 : vector<4x32xf32>
    %102 = arith.mulf %101, %95 : vector<4x32xf32>
    %103 = arith.addf %99, %102 : vector<4x32xf32>
    %104 = math.tanh %103 : vector<4x32xf32>
    %105 = arith.mulf %97, %104 : vector<4x32xf32>
    %cst_29 = arith.constant 1.000000e+00 : f32
    %106 = vector.broadcast %cst_29 : f32 to vector<4x32xf32>
    %107 = arith.subf %106, %97 : vector<4x32xf32>
    %108 = arith.mulf %107, %98 : vector<4x32xf32>
    %109 = arith.addf %105, %108 : vector<4x32xf32>
    %110 = arith.index_cast %c4_i32 : i32 to index
    %c0_30 = arith.constant 0 : index
    %c0_31 = arith.constant 0 : index
    %111 = vector.load %arg3[%110, %c0_30, %c0_31] : memref<8x4x32xf32, #tpu.memory_space<vmem>>, vector<1x4x32xf32>
    %112 = vector.shape_cast %111 : vector<1x4x32xf32> to vector<4x32xf32>
    %113 = vector.shape_cast %109 : vector<4x32xf32> to vector<1x4x32xf32>
    tpu.vector_store %arg3[%110, %c0_30, %c0_31], %113 {strides = array<i32>} : memref<8x4x32xf32, #tpu.memory_space<vmem>>, vector<1x4x32xf32>,
    %c5_i32 = arith.constant 5 : i32
    %114 = arith.index_cast %c5_i32 : i32 to index
    %c0_32 = arith.constant 0 : index
    %c0_33 = arith.constant 0 : index
    %115 = vector.load %arg1[%114, %c0_32, %c0_33] : memref<8x4x128xf32, #tpu.memory_space<vmem>>, vector<1x4x128xf32>
    %116 = vector.shape_cast %115 : vector<1x4x128xf32> to vector<4x128xf32>
    %117 = vector.extract_strided_slice %116 {offsets = [0, 0], sizes = [4, 32], strides = [1, 1]} : vector<4x128xf32> to vector<4x32xf32>
    %118 = vector.extract_strided_slice %116 {offsets = [0, 32], sizes = [4, 32], strides = [1, 1]} : vector<4x128xf32> to vector<4x32xf32>
    %119 = vector.extract_strided_slice %116 {offsets = [0, 64], sizes = [4, 32], strides = [1, 1]} : vector<4x128xf32> to vector<4x32xf32>
    %120 = vector.extract_strided_slice %116 {offsets = [0, 96], sizes = [4, 32], strides = [1, 1]} : vector<4x128xf32> to vector<4x32xf32>
    %121 = arith.mulf %118, %103 : vector<4x32xf32>
    %cst_34 = arith.constant 1.000000e+00 : f32
    %122 = vector.broadcast %cst_34 : f32 to vector<4x32xf32>
    %123 = arith.subf %122, %118 : vector<4x32xf32>
    %124 = arith.mulf %123, %117 : vector<4x32xf32>
    %125 = arith.addf %121, %124 : vector<4x32xf32>
    %126 = math.tanh %125 : vector<4x32xf32>
    %127 = arith.mulf %119, %126 : vector<4x32xf32>
    %cst_35 = arith.constant 1.000000e+00 : f32
    %128 = vector.broadcast %cst_35 : f32 to vector<4x32xf32>
    %129 = arith.subf %128, %119 : vector<4x32xf32>
    %130 = arith.mulf %129, %120 : vector<4x32xf32>
    %131 = arith.addf %127, %130 : vector<4x32xf32>
    %132 = arith.index_cast %c5_i32 : i32 to index
    %c0_36 = arith.constant 0 : index
    %c0_37 = arith.constant 0 : index
    %133 = vector.load %arg3[%132, %c0_36, %c0_37] : memref<8x4x32xf32, #tpu.memory_space<vmem>>, vector<1x4x32xf32>
    %134 = vector.shape_cast %133 : vector<1x4x32xf32> to vector<4x32xf32>
    %135 = vector.shape_cast %131 : vector<4x32xf32> to vector<1x4x32xf32>
    tpu.vector_store %arg3[%132, %c0_36, %c0_37], %135 {strides = array<i32>} : memref<8x4x32xf32, #tpu.memory_space<vmem>>, vector<1x4x32xf32>,
    %c6_i32 = arith.constant 6 : i32
    %136 = arith.index_cast %c6_i32 : i32 to index
    %c0_38 = arith.constant 0 : index
    %c0_39 = arith.constant 0 : index
    %137 = vector.load %arg1[%136, %c0_38, %c0_39] : memref<8x4x128xf32, #tpu.memory_space<vmem>>, vector<1x4x128xf32>
    %138 = vector.shape_cast %137 : vector<1x4x128xf32> to vector<4x128xf32>
    %139 = vector.extract_strided_slice %138 {offsets = [0, 0], sizes = [4, 32], strides = [1, 1]} : vector<4x128xf32> to vector<4x32xf32>
    %140 = vector.extract_strided_slice %138 {offsets = [0, 32], sizes = [4, 32], strides = [1, 1]} : vector<4x128xf32> to vector<4x32xf32>
    %141 = vector.extract_strided_slice %138 {offsets = [0, 64], sizes = [4, 32], strides = [1, 1]} : vector<4x128xf32> to vector<4x32xf32>
    %142 = vector.extract_strided_slice %138 {offsets = [0, 96], sizes = [4, 32], strides = [1, 1]} : vector<4x128xf32> to vector<4x32xf32>
    %143 = arith.mulf %140, %125 : vector<4x32xf32>
    %cst_40 = arith.constant 1.000000e+00 : f32
    %144 = vector.broadcast %cst_40 : f32 to vector<4x32xf32>
    %145 = arith.subf %144, %140 : vector<4x32xf32>
    %146 = arith.mulf %145, %139 : vector<4x32xf32>
    %147 = arith.addf %143, %146 : vector<4x32xf32>
    %148 = math.tanh %147 : vector<4x32xf32>
    %149 = arith.mulf %141, %148 : vector<4x32xf32>
    %cst_41 = arith.constant 1.000000e+00 : f32
    %150 = vector.broadcast %cst_41 : f32 to vector<4x32xf32>
    %151 = arith.subf %150, %141 : vector<4x32xf32>
    %152 = arith.mulf %151, %142 : vector<4x32xf32>
    %153 = arith.addf %149, %152 : vector<4x32xf32>
    %154 = arith.index_cast %c6_i32 : i32 to index
    %c0_42 = arith.constant 0 : index
    %c0_43 = arith.constant 0 : index
    %155 = vector.load %arg3[%154, %c0_42, %c0_43] : memref<8x4x32xf32, #tpu.memory_space<vmem>>, vector<1x4x32xf32>
    %156 = vector.shape_cast %155 : vector<1x4x32xf32> to vector<4x32xf32>
    %157 = vector.shape_cast %153 : vector<4x32xf32> to vector<1x4x32xf32>
    tpu.vector_store %arg3[%154, %c0_42, %c0_43], %157 {strides = array<i32>} : memref<8x4x32xf32, #tpu.memory_space<vmem>>, vector<1x4x32xf32>,
    %c7_i32 = arith.constant 7 : i32
    %158 = arith.index_cast %c7_i32 : i32 to index
    %c0_44 = arith.constant 0 : index
    %c0_45 = arith.constant 0 : index
    %159 = vector.load %arg1[%158, %c0_44, %c0_45] : memref<8x4x128xf32, #tpu.memory_space<vmem>>, vector<1x4x128xf32>
    %160 = vector.shape_cast %159 : vector<1x4x128xf32> to vector<4x128xf32>
    %161 = vector.extract_strided_slice %160 {offsets = [0, 0], sizes = [4, 32], strides = [1, 1]} : vector<4x128xf32> to vector<4x32xf32>
    %162 = vector.extract_strided_slice %160 {offsets = [0, 32], sizes = [4, 32], strides = [1, 1]} : vector<4x128xf32> to vector<4x32xf32>
    %163 = vector.extract_strided_slice %160 {offsets = [0, 64], sizes = [4, 32], strides = [1, 1]} : vector<4x128xf32> to vector<4x32xf32>
    %164 = vector.extract_strided_slice %160 {offsets = [0, 96], sizes = [4, 32], strides = [1, 1]} : vector<4x128xf32> to vector<4x32xf32>
    %165 = arith.mulf %162, %147 : vector<4x32xf32>
    %cst_46 = arith.constant 1.000000e+00 : f32
    %166 = vector.broadcast %cst_46 : f32 to vector<4x32xf32>
    %167 = arith.subf %166, %162 : vector<4x32xf32>
    %168 = arith.mulf %167, %161 : vector<4x32xf32>
    %169 = arith.addf %165, %168 : vector<4x32xf32>
    %170 = math.tanh %169 : vector<4x32xf32>
    %171 = arith.mulf %163, %170 : vector<4x32xf32>
    %cst_47 = arith.constant 1.000000e+00 : f32
    %172 = vector.broadcast %cst_47 : f32 to vector<4x32xf32>
    %173 = arith.subf %172, %163 : vector<4x32xf32>
    %174 = arith.mulf %173, %164 : vector<4x32xf32>
    %175 = arith.addf %171, %174 : vector<4x32xf32>
    %176 = arith.index_cast %c7_i32 : i32 to index
    %c0_48 = arith.constant 0 : index
    %c0_49 = arith.constant 0 : index
    %177 = vector.load %arg3[%176, %c0_48, %c0_49] : memref<8x4x32xf32, #tpu.memory_space<vmem>>, vector<1x4x32xf32>
    %178 = vector.shape_cast %177 : vector<1x4x32xf32> to vector<4x32xf32>
    %179 = vector.shape_cast %175 : vector<4x32xf32> to vector<1x4x32xf32>
    tpu.vector_store %arg3[%176, %c0_48, %c0_49], %179 {strides = array<i32>} : memref<8x4x32xf32, #tpu.memory_space<vmem>>, vector<1x4x32xf32>,
    %c8_i32 = arith.constant 8 : i32
    %c0_50 = arith.constant 0 : index
    %c0_51 = arith.constant 0 : index
    %180 = vector.load %arg5[%c0_50, %c0_51] : memref<4x32xf32, #tpu.memory_space<vmem>>, vector<4x32xf32>
    tpu.vector_store %arg5[%c0_50, %c0_51], %169 {strides = array<i32>} : memref<4x32xf32, #tpu.memory_space<vmem>>, vector<4x32xf32>,
    %c0_i32_52 = arith.constant 0 : i32
    %181 = arith.cmpi eq, %arg0, %c0_i32_52 : i32
    %182 = arith.extui %181 : i1 to i32
    %c0_i32_53 = arith.constant 0 : i32
    %183 = arith.cmpi ne, %182, %c0_i32_53 : i32
    scf.if %183 {
      %c0_54 = arith.constant 0 : index
      %c0_55 = arith.constant 0 : index
      %184 = vector.load %arg4[%c0_54, %c0_55] : memref<4x32xf32, #tpu.memory_space<vmem>>, vector<4x32xf32>
      tpu.vector_store %arg4[%c0_54, %c0_55], %169 {strides = array<i32>} : memref<4x32xf32, #tpu.memory_space<vmem>>, vector<4x32xf32>,
    } else {
    }
    return
  }
  func.func @transform_0(%arg0: i32) -> (i32, i32, i32) {
    %c0_i32 = arith.constant 0 : i32
    %c0_i32_0 = arith.constant 0 : i32
    %c0_i32_1 = arith.constant 0 : i32
    return %arg0, %c0_i32, %c0_i32_0 : i32, i32, i32
  }
  func.func @transform_1(%arg0: i32) -> (i32, i32) {
    %c0_i32 = arith.constant 0 : i32
    %c0_i32_0 = arith.constant 0 : i32
    %c0_i32_1 = arith.constant 0 : i32
    return %c0_i32, %c0_i32_0 : i32, i32
  }
  func.func @transform_2(%arg0: i32) -> (i32, i32, i32) {
    %c0_i32 = arith.constant 0 : i32
    %c0_i32_0 = arith.constant 0 : i32
    %c0_i32_1 = arith.constant 0 : i32
    return %arg0, %c0_i32, %c0_i32_0 : i32, i32, i32
  }
  func.func @transform_3(%arg0: i32) -> (i32, i32) {
    %c0_i32 = arith.constant 0 : i32
    %c0_i32_0 = arith.constant 0 : i32
    %c0_i32_1 = arith.constant 0 : i32
    return %c0_i32, %c0_i32_0 : i32, i32
  }
}

module attributes {stable_mosaic.version = 11 : i64} {
  func.func @_scan_kernel(%arg0: i32, %arg1: memref<8x4x128xf32, #tpu.memory_space<vmem>>, %arg2: memref<4x32xf32, #tpu.memory_space<vmem>>, %arg3: memref<8x4x32xf32, #tpu.memory_space<vmem>>, %arg4: memref<4x32xf32, #tpu.memory_space<vmem>>, %arg5: memref<4x32xf32, #tpu.memory_space<vmem>>) attributes {dimension_semantics = [#tpu.dimension_semantics<arbitrary>], iteration_bounds = array<i64: 1>, scalar_prefetch = 0 : i64, scratch_operands = 1 : i64, tpu.core_type = #tpu.core_type<tc>, window_params = [{transform_indices = @transform_0, window_bounds = array<i64: 8, 4, 128>}, {pipeline_mode = #tpu.pipeline_mode<synchronous>, transform_indices = @transform_1, window_bounds = array<i64: 4, 32>}, {transform_indices = @transform_2, window_bounds = array<i64: 8, 4, 32>}, {pipeline_mode = #tpu.pipeline_mode<synchronous>, transform_indices = @transform_3, window_bounds = array<i64: 4, 32>}]} {
    %c0_i32 = arith.constant 0 : i32
    %0 = arith.cmpi eq, %arg0, %c0_i32 : i32
    %1 = arith.extui %0 : i1 to i32
    %c0_i32_0 = arith.constant 0 : i32
    %2 = arith.cmpi ne, %1, %c0_i32_0 : i32
    scf.if %2 {
      %c0_54 = arith.constant 0 : index
      %c0_55 = arith.constant 0 : index
      %184 = vector.load %arg2[%c0_54, %c0_55] : memref<4x32xf32, #tpu.memory_space<vmem>>, vector<4x32xf32>
      %c0_56 = arith.constant 0 : index
      %c0_57 = arith.constant 0 : index
      %185 = vector.load %arg5[%c0_56, %c0_57] : memref<4x32xf32, #tpu.memory_space<vmem>>, vector<4x32xf32>
      tpu.vector_store %arg5[%c0_56, %c0_57], %184 {strides = array<i32>} : memref<4x32xf32, #tpu.memory_space<vmem>>, vector<4x32xf32>,
    } else {
    }
    %c0 = arith.constant 0 : index
    %c0_1 = arith.constant 0 : index
    %3 = vector.load %arg5[%c0, %c0_1] : memref<4x32xf32, #tpu.memory_space<vmem>>, vector<4x32xf32>
    %c0_i32_2 = arith.constant 0 : i32
    %4 = arith.index_cast %c0_i32_2 : i32 to index
    %c0_3 = arith.constant 0 : index
    %c0_4 = arith.constant 0 : index
    %5 = vector.load %arg1[%4, %c0_3, %c0_4] : memref<8x4x128xf32, #tpu.memory_space<vmem>>, vector<1x4x128xf32>
    %6 = vector.shape_cast %5 : vector<1x4x128xf32> to vector<4x128xf32>
    %7 = vector.extract_strided_slice %6 {offsets = [0, 0], sizes = [4, 32], strides = [1, 1]} : vector<4x128xf32> to vector<4x32xf32>
    %8 = vector.extract_strided_slice %6 {offsets = [0, 32], sizes = [4, 32], strides = [1, 1]} : vector<4x128xf32> to vector<4x32xf32>
    %9 = vector.extract_strided_slice %6 {offsets = [0, 64], sizes = [4, 32], strides = [1, 1]} : vector<4x128xf32> to vector<4x32xf32>
    %10 = vector.extract_strided_slice %6 {offsets = [0, 96], sizes = [4, 32], strides = [1, 1]} : vector<4x128xf32> to vector<4x32xf32>
    %11 = arith.mulf %8, %3 : vector<4x32xf32>
    %cst = arith.constant 1.000000e+00 : f32
    %12 = vector.broadcast %cst : f32 to vector<4x32xf32>
    %13 = arith.subf %12, %8 : vector<4x32xf32>
    %14 = arith.mulf %13, %7 : vector<4x32xf32>
    %15 = arith.addf %11, %14 : vector<4x32xf32>
    %16 = math.tanh %15 : vector<4x32xf32>
    %17 = arith.mulf %9, %16 : vector<4x32xf32>
    %cst_5 = arith.constant 1.000000e+00 : f32
    %18 = vector.broadcast %cst_5 : f32 to vector<4x32xf32>
    %19 = arith.subf %18, %9 : vector<4x32xf32>
    %20 = arith.mulf %19, %10 : vector<4x32xf32>
    %21 = arith.addf %17, %20 : vector<4x32xf32>
    %22 = arith.index_cast %c0_i32_2 : i32 to index
    %c0_6 = arith.constant 0 : index
    %c0_7 = arith.constant 0 : index
    %23 = vector.load %arg3[%22, %c0_6, %c0_7] : memref<8x4x32xf32, #tpu.memory_space<vmem>>, vector<1x4x32xf32>
    %24 = vector.shape_cast %23 : vector<1x4x32xf32> to vector<4x32xf32>
    %25 = vector.shape_cast %21 : vector<4x32xf32> to vector<1x4x32xf32>
    tpu.vector_store %arg3[%22, %c0_6, %c0_7], %25 {strides = array<i32>} : memref<8x4x32xf32, #tpu.memory_space<vmem>>, vector<1x4x32xf32>,
    %c1_i32 = arith.constant 1 : i32
    %26 = arith.index_cast %c1_i32 : i32 to index
    %c0_8 = arith.constant 0 : index
    %c0_9 = arith.constant 0 : index
    %27 = vector.load %arg1[%26, %c0_8, %c0_9] : memref<8x4x128xf32, #tpu.memory_space<vmem>>, vector<1x4x128xf32>
    %28 = vector.shape_cast %27 : vector<1x4x128xf32> to vector<4x128xf32>
    %29 = vector.extract_strided_slice %28 {offsets = [0, 0], sizes = [4, 32], strides = [1, 1]} : vector<4x128xf32> to vector<4x32xf32>
    %30 = vector.extract_strided_slice %28 {offsets = [0, 32], sizes = [4, 32], strides = [1, 1]} : vector<4x128xf32> to vector<4x32xf32>
    %31 = vector.extract_strided_slice %28 {offsets = [0, 64], sizes = [4, 32], strides = [1, 1]} : vector<4x128xf32> to vector<4x32xf32>
    %32 = vector.extract_strided_slice %28 {offsets = [0, 96], sizes = [4, 32], strides = [1, 1]} : vector<4x128xf32> to vector<4x32xf32>
    %33 = arith.mulf %30, %15 : vector<4x32xf32>
    %cst_10 = arith.constant 1.000000e+00 : f32
    %34 = vector.broadcast %cst_10 : f32 to vector<4x32xf32>
    %35 = arith.subf %34, %30 : vector<4x32xf32>
    %36 = arith.mulf %35, %29 : vector<4x32xf32>
    %37 = arith.addf %33, %36 : vector<4x32xf32>
    %38 = math.tanh %37 : vector<4x32xf32>
    %39 = arith.mulf %31, %38 : vector<4x32xf32>
    %cst_11 = arith.constant 1.000000e+00 : f32
    %40 = vector.broadcast %cst_11 : f32 to vector<4x32xf32>
    %41 = arith.subf %40, %31 : vector<4x32xf32>
    %42 = arith.mulf %41, %32 : vector<4x32xf32>
    %43 = arith.addf %39, %42 : vector<4x32xf32>
    %44 = arith.index_cast %c1_i32 : i32 to index
    %c0_12 = arith.constant 0 : index
    %c0_13 = arith.constant 0 : index
    %45 = vector.load %arg3[%44, %c0_12, %c0_13] : memref<8x4x32xf32, #tpu.memory_space<vmem>>, vector<1x4x32xf32>
    %46 = vector.shape_cast %45 : vector<1x4x32xf32> to vector<4x32xf32>
    %47 = vector.shape_cast %43 : vector<4x32xf32> to vector<1x4x32xf32>
    tpu.vector_store %arg3[%44, %c0_12, %c0_13], %47 {strides = array<i32>} : memref<8x4x32xf32, #tpu.memory_space<vmem>>, vector<1x4x32xf32>,
    %c2_i32 = arith.constant 2 : i32
    %48 = arith.index_cast %c2_i32 : i32 to index
    %c0_14 = arith.constant 0 : index
    %c0_15 = arith.constant 0 : index
    %49 = vector.load %arg1[%48, %c0_14, %c0_15] : memref<8x4x128xf32, #tpu.memory_space<vmem>>, vector<1x4x128xf32>
    %50 = vector.shape_cast %49 : vector<1x4x128xf32> to vector<4x128xf32>
    %51 = vector.extract_strided_slice %50 {offsets = [0, 0], sizes = [4, 32], strides = [1, 1]} : vector<4x128xf32> to vector<4x32xf32>
    %52 = vector.extract_strided_slice %50 {offsets = [0, 32], sizes = [4, 32], strides = [1, 1]} : vector<4x128xf32> to vector<4x32xf32>
    %53 = vector.extract_strided_slice %50 {offsets = [0, 64], sizes = [4, 32], strides = [1, 1]} : vector<4x128xf32> to vector<4x32xf32>
    %54 = vector.extract_strided_slice %50 {offsets = [0, 96], sizes = [4, 32], strides = [1, 1]} : vector<4x128xf32> to vector<4x32xf32>
    %55 = arith.mulf %52, %37 : vector<4x32xf32>
    %cst_16 = arith.constant 1.000000e+00 : f32
    %56 = vector.broadcast %cst_16 : f32 to vector<4x32xf32>
    %57 = arith.subf %56, %52 : vector<4x32xf32>
    %58 = arith.mulf %57, %51 : vector<4x32xf32>
    %59 = arith.addf %55, %58 : vector<4x32xf32>
    %60 = math.tanh %59 : vector<4x32xf32>
    %61 = arith.mulf %53, %60 : vector<4x32xf32>
    %cst_17 = arith.constant 1.000000e+00 : f32
    %62 = vector.broadcast %cst_17 : f32 to vector<4x32xf32>
    %63 = arith.subf %62, %53 : vector<4x32xf32>
    %64 = arith.mulf %63, %54 : vector<4x32xf32>
    %65 = arith.addf %61, %64 : vector<4x32xf32>
    %66 = arith.index_cast %c2_i32 : i32 to index
    %c0_18 = arith.constant 0 : index
    %c0_19 = arith.constant 0 : index
    %67 = vector.load %arg3[%66, %c0_18, %c0_19] : memref<8x4x32xf32, #tpu.memory_space<vmem>>, vector<1x4x32xf32>
    %68 = vector.shape_cast %67 : vector<1x4x32xf32> to vector<4x32xf32>
    %69 = vector.shape_cast %65 : vector<4x32xf32> to vector<1x4x32xf32>
    tpu.vector_store %arg3[%66, %c0_18, %c0_19], %69 {strides = array<i32>} : memref<8x4x32xf32, #tpu.memory_space<vmem>>, vector<1x4x32xf32>,
    %c3_i32 = arith.constant 3 : i32
    %70 = arith.index_cast %c3_i32 : i32 to index
    %c0_20 = arith.constant 0 : index
    %c0_21 = arith.constant 0 : index
    %71 = vector.load %arg1[%70, %c0_20, %c0_21] : memref<8x4x128xf32, #tpu.memory_space<vmem>>, vector<1x4x128xf32>
    %72 = vector.shape_cast %71 : vector<1x4x128xf32> to vector<4x128xf32>
    %73 = vector.extract_strided_slice %72 {offsets = [0, 0], sizes = [4, 32], strides = [1, 1]} : vector<4x128xf32> to vector<4x32xf32>
    %74 = vector.extract_strided_slice %72 {offsets = [0, 32], sizes = [4, 32], strides = [1, 1]} : vector<4x128xf32> to vector<4x32xf32>
    %75 = vector.extract_strided_slice %72 {offsets = [0, 64], sizes = [4, 32], strides = [1, 1]} : vector<4x128xf32> to vector<4x32xf32>
    %76 = vector.extract_strided_slice %72 {offsets = [0, 96], sizes = [4, 32], strides = [1, 1]} : vector<4x128xf32> to vector<4x32xf32>
    %77 = arith.mulf %74, %59 : vector<4x32xf32>
    %cst_22 = arith.constant 1.000000e+00 : f32
    %78 = vector.broadcast %cst_22 : f32 to vector<4x32xf32>
    %79 = arith.subf %78, %74 : vector<4x32xf32>
    %80 = arith.mulf %79, %73 : vector<4x32xf32>
    %81 = arith.addf %77, %80 : vector<4x32xf32>
    %82 = math.tanh %81 : vector<4x32xf32>
    %83 = arith.mulf %75, %82 : vector<4x32xf32>
    %cst_23 = arith.constant 1.000000e+00 : f32
    %84 = vector.broadcast %cst_23 : f32 to vector<4x32xf32>
    %85 = arith.subf %84, %75 : vector<4x32xf32>
    %86 = arith.mulf %85, %76 : vector<4x32xf32>
    %87 = arith.addf %83, %86 : vector<4x32xf32>
    %88 = arith.index_cast %c3_i32 : i32 to index
    %c0_24 = arith.constant 0 : index
    %c0_25 = arith.constant 0 : index
    %89 = vector.load %arg3[%88, %c0_24, %c0_25] : memref<8x4x32xf32, #tpu.memory_space<vmem>>, vector<1x4x32xf32>
    %90 = vector.shape_cast %89 : vector<1x4x32xf32> to vector<4x32xf32>
    %91 = vector.shape_cast %87 : vector<4x32xf32> to vector<1x4x32xf32>
    tpu.vector_store %arg3[%88, %c0_24, %c0_25], %91 {strides = array<i32>} : memref<8x4x32xf32, #tpu.memory_space<vmem>>, vector<1x4x32xf32>,
    %c4_i32 = arith.constant 4 : i32
    %92 = arith.index_cast %c4_i32 : i32 to index
    %c0_26 = arith.constant 0 : index
    %c0_27 = arith.constant 0 : index
    %93 = vector.load %arg1[%92, %c0_26, %c0_27] : memref<8x4x128xf32, #tpu.memory_space<vmem>>, vector<1x4x128xf32>
    %94 = vector.shape_cast %93 : vector<1x4x128xf32> to vector<4x128xf32>
    %95 = vector.extract_strided_slice %94 {offsets = [0, 0], sizes = [4, 32], strides = [1, 1]} : vector<4x128xf32> to vector<4x32xf32>
    %96 = vector.extract_strided_slice %94 {offsets = [0, 32], sizes = [4, 32], strides = [1, 1]} : vector<4x128xf32> to vector<4x32xf32>
    %97 = vector.extract_strided_slice %94 {offsets = [0, 64], sizes = [4, 32], strides = [1, 1]} : vector<4x128xf32> to vector<4x32xf32>
    %98 = vector.extract_strided_slice %94 {offsets = [0, 96], sizes = [4, 32], strides = [1, 1]} : vector<4x128xf32> to vector<4x32xf32>
    %99 = arith.mulf %96, %81 : vector<4x32xf32>
    %cst_28 = arith.constant 1.000000e+00 : f32
    %100 = vector.broadcast %cst_28 : f32 to vector<4x32xf32>
    %101 = arith.subf %100, %96 : vector<4x32xf32>
    %102 = arith.mulf %101, %95 : vector<4x32xf32>
    %103 = arith.addf %99, %102 : vector<4x32xf32>
    %104 = math.tanh %103 : vector<4x32xf32>
    %105 = arith.mulf %97, %104 : vector<4x32xf32>
    %cst_29 = arith.constant 1.000000e+00 : f32
    %106 = vector.broadcast %cst_29 : f32 to vector<4x32xf32>
    %107 = arith.subf %106, %97 : vector<4x32xf32>
    %108 = arith.mulf %107, %98 : vector<4x32xf32>
    %109 = arith.addf %105, %108 : vector<4x32xf32>
    %110 = arith.index_cast %c4_i32 : i32 to index
    %c0_30 = arith.constant 0 : index
    %c0_31 = arith.constant 0 : index
    %111 = vector.load %arg3[%110, %c0_30, %c0_31] : memref<8x4x32xf32, #tpu.memory_space<vmem>>, vector<1x4x32xf32>
    %112 = vector.shape_cast %111 : vector<1x4x32xf32> to vector<4x32xf32>
    %113 = vector.shape_cast %109 : vector<4x32xf32> to vector<1x4x32xf32>
    tpu.vector_store %arg3[%110, %c0_30, %c0_31], %113 {strides = array<i32>} : memref<8x4x32xf32, #tpu.memory_space<vmem>>, vector<1x4x32xf32>,
    %c5_i32 = arith.constant 5 : i32
    %114 = arith.index_cast %c5_i32 : i32 to index
    %c0_32 = arith.constant 0 : index
    %c0_33 = arith.constant 0 : index
    %115 = vector.load %arg1[%114, %c0_32, %c0_33] : memref<8x4x128xf32, #tpu.memory_space<vmem>>, vector<1x4x128xf32>
    %116 = vector.shape_cast %115 : vector<1x4x128xf32> to vector<4x128xf32>
    %117 = vector.extract_strided_slice %116 {offsets = [0, 0], sizes = [4, 32], strides = [1, 1]} : vector<4x128xf32> to vector<4x32xf32>
    %118 = vector.extract_strided_slice %116 {offsets = [0, 32], sizes = [4, 32], strides = [1, 1]} : vector<4x128xf32> to vector<4x32xf32>
    %119 = vector.extract_strided_slice %116 {offsets = [0, 64], sizes = [4, 32], strides = [1, 1]} : vector<4x128xf32> to vector<4x32xf32>
    %120 = vector.extract_strided_slice %116 {offsets = [0, 96], sizes = [4, 32], strides = [1, 1]} : vector<4x128xf32> to vector<4x32xf32>
    %121 = arith.mulf %118, %103 : vector<4x32xf32>
    %cst_34 = arith.constant 1.000000e+00 : f32
    %122 = vector.broadcast %cst_34 : f32 to vector<4x32xf32>
    %123 = arith.subf %122, %118 : vector<4x32xf32>
    %124 = arith.mulf %123, %117 : vector<4x32xf32>
    %125 = arith.addf %121, %124 : vector<4x32xf32>
    %126 = math.tanh %125 : vector<4x32xf32>
    %127 = arith.mulf %119, %126 : vector<4x32xf32>
    %cst_35 = arith.constant 1.000000e+00 : f32
    %128 = vector.broadcast %cst_35 : f32 to vector<4x32xf32>
    %129 = arith.subf %128, %119 : vector<4x32xf32>
    %130 = arith.mulf %129, %120 : vector<4x32xf32>
    %131 = arith.addf %127, %130 : vector<4x32xf32>
    %132 = arith.index_cast %c5_i32 : i32 to index
    %c0_36 = arith.constant 0 : index
    %c0_37 = arith.constant 0 : index
    %133 = vector.load %arg3[%132, %c0_36, %c0_37] : memref<8x4x32xf32, #tpu.memory_space<vmem>>, vector<1x4x32xf32>
    %134 = vector.shape_cast %133 : vector<1x4x32xf32> to vector<4x32xf32>
    %135 = vector.shape_cast %131 : vector<4x32xf32> to vector<1x4x32xf32>
    tpu.vector_store %arg3[%132, %c0_36, %c0_37], %135 {strides = array<i32>} : memref<8x4x32xf32, #tpu.memory_space<vmem>>, vector<1x4x32xf32>,
    %c6_i32 = arith.constant 6 : i32
    %136 = arith.index_cast %c6_i32 : i32 to index
    %c0_38 = arith.constant 0 : index
    %c0_39 = arith.constant 0 : index
    %137 = vector.load %arg1[%136, %c0_38, %c0_39] : memref<8x4x128xf32, #tpu.memory_space<vmem>>, vector<1x4x128xf32>
    %138 = vector.shape_cast %137 : vector<1x4x128xf32> to vector<4x128xf32>
    %139 = vector.extract_strided_slice %138 {offsets = [0, 0], sizes = [4, 32], strides = [1, 1]} : vector<4x128xf32> to vector<4x32xf32>
    %140 = vector.extract_strided_slice %138 {offsets = [0, 32], sizes = [4, 32], strides = [1, 1]} : vector<4x128xf32> to vector<4x32xf32>
    %141 = vector.extract_strided_slice %138 {offsets = [0, 64], sizes = [4, 32], strides = [1, 1]} : vector<4x128xf32> to vector<4x32xf32>
    %142 = vector.extract_strided_slice %138 {offsets = [0, 96], sizes = [4, 32], strides = [1, 1]} : vector<4x128xf32> to vector<4x32xf32>
    %143 = arith.mulf %140, %125 : vector<4x32xf32>
    %cst_40 = arith.constant 1.000000e+00 : f32
    %144 = vector.broadcast %cst_40 : f32 to vector<4x32xf32>
    %145 = arith.subf %144, %140 : vector<4x32xf32>
    %146 = arith.mulf %145, %139 : vector<4x32xf32>
    %147 = arith.addf %143, %146 : vector<4x32xf32>
    %148 = math.tanh %147 : vector<4x32xf32>
    %149 = arith.mulf %141, %148 : vector<4x32xf32>
    %cst_41 = arith.constant 1.000000e+00 : f32
    %150 = vector.broadcast %cst_41 : f32 to vector<4x32xf32>
    %151 = arith.subf %150, %141 : vector<4x32xf32>
    %152 = arith.mulf %151, %142 : vector<4x32xf32>
    %153 = arith.addf %149, %152 : vector<4x32xf32>
    %154 = arith.index_cast %c6_i32 : i32 to index
    %c0_42 = arith.constant 0 : index
    %c0_43 = arith.constant 0 : index
    %155 = vector.load %arg3[%154, %c0_42, %c0_43] : memref<8x4x32xf32, #tpu.memory_space<vmem>>, vector<1x4x32xf32>
    %156 = vector.shape_cast %155 : vector<1x4x32xf32> to vector<4x32xf32>
    %157 = vector.shape_cast %153 : vector<4x32xf32> to vector<1x4x32xf32>
    tpu.vector_store %arg3[%154, %c0_42, %c0_43], %157 {strides = array<i32>} : memref<8x4x32xf32, #tpu.memory_space<vmem>>, vector<1x4x32xf32>,
    %c7_i32 = arith.constant 7 : i32
    %158 = arith.index_cast %c7_i32 : i32 to index
    %c0_44 = arith.constant 0 : index
    %c0_45 = arith.constant 0 : index
    %159 = vector.load %arg1[%158, %c0_44, %c0_45] : memref<8x4x128xf32, #tpu.memory_space<vmem>>, vector<1x4x128xf32>
    %160 = vector.shape_cast %159 : vector<1x4x128xf32> to vector<4x128xf32>
    %161 = vector.extract_strided_slice %160 {offsets = [0, 0], sizes = [4, 32], strides = [1, 1]} : vector<4x128xf32> to vector<4x32xf32>
    %162 = vector.extract_strided_slice %160 {offsets = [0, 32], sizes = [4, 32], strides = [1, 1]} : vector<4x128xf32> to vector<4x32xf32>
    %163 = vector.extract_strided_slice %160 {offsets = [0, 64], sizes = [4, 32], strides = [1, 1]} : vector<4x128xf32> to vector<4x32xf32>
    %164 = vector.extract_strided_slice %160 {offsets = [0, 96], sizes = [4, 32], strides = [1, 1]} : vector<4x128xf32> to vector<4x32xf32>
    %165 = arith.mulf %162, %147 : vector<4x32xf32>
    %cst_46 = arith.constant 1.000000e+00 : f32
    %166 = vector.broadcast %cst_46 : f32 to vector<4x32xf32>
    %167 = arith.subf %166, %162 : vector<4x32xf32>
    %168 = arith.mulf %167, %161 : vector<4x32xf32>
    %169 = arith.addf %165, %168 : vector<4x32xf32>
    %170 = math.tanh %169 : vector<4x32xf32>
    %171 = arith.mulf %163, %170 : vector<4x32xf32>
    %cst_47 = arith.constant 1.000000e+00 : f32
    %172 = vector.broadcast %cst_47 : f32 to vector<4x32xf32>
    %173 = arith.subf %172, %163 : vector<4x32xf32>
    %174 = arith.mulf %173, %164 : vector<4x32xf32>
    %175 = arith.addf %171, %174 : vector<4x32xf32>
    %176 = arith.index_cast %c7_i32 : i32 to index
    %c0_48 = arith.constant 0 : index
    %c0_49 = arith.constant 0 : index
    %177 = vector.load %arg3[%176, %c0_48, %c0_49] : memref<8x4x32xf32, #tpu.memory_space<vmem>>, vector<1x4x32xf32>
    %178 = vector.shape_cast %177 : vector<1x4x32xf32> to vector<4x32xf32>
    %179 = vector.shape_cast %175 : vector<4x32xf32> to vector<1x4x32xf32>
    tpu.vector_store %arg3[%176, %c0_48, %c0_49], %179 {strides = array<i32>} : memref<8x4x32xf32, #tpu.memory_space<vmem>>, vector<1x4x32xf32>,
    %c8_i32 = arith.constant 8 : i32
    %c0_50 = arith.constant 0 : index
    %c0_51 = arith.constant 0 : index
    %180 = vector.load %arg5[%c0_50, %c0_51] : memref<4x32xf32, #tpu.memory_space<vmem>>, vector<4x32xf32>
    tpu.vector_store %arg5[%c0_50, %c0_51], %169 {strides = array<i32>} : memref<4x32xf32, #tpu.memory_space<vmem>>, vector<4x32xf32>,
    %c0_i32_52 = arith.constant 0 : i32
    %181 = arith.cmpi eq, %arg0, %c0_i32_52 : i32
    %182 = arith.extui %181 : i1 to i32
    %c0_i32_53 = arith.constant 0 : i32
    %183 = arith.cmpi ne, %182, %c0_i32_53 : i32
    scf.if %183 {
      %c0_54 = arith.constant 0 : index
      %c0_55 = arith.constant 0 : index
      %184 = vector.load %arg4[%c0_54, %c0_55] : memref<4x32xf32, #tpu.memory_space<vmem>>, vector<4x32xf32>
      tpu.vector_store %arg4[%c0_54, %c0_55], %169 {strides = array<i32>} : memref<4x32xf32, #tpu.memory_space<vmem>>, vector<4x32xf32>,
    } else {
    }
    return
  }
  func.func @transform_0(%arg0: i32) -> (i32, i32, i32) {
    %c0_i32 = arith.constant 0 : i32
    %c0_i32_0 = arith.constant 0 : i32
    %c0_i32_1 = arith.constant 0 : i32
    return %arg0, %c0_i32, %c0_i32_0 : i32, i32, i32
  }
  func.func @transform_1(%arg0: i32) -> (i32, i32) {
    %c0_i32 = arith.constant 0 : i32
    %c0_i32_0 = arith.constant 0 : i32
    %c0_i32_1 = arith.constant 0 : i32
    return %c0_i32, %c0_i32_0 : i32, i32
  }
  func.func @transform_2(%arg0: i32) -> (i32, i32, i32) {
    %c0_i32 = arith.constant 0 : i32
    %c0_i32_0 = arith.constant 0 : i32
    %c0_i32_1 = arith.constant 0 : i32
    return %arg0, %c0_i32, %c0_i32_0 : i32, i32, i32
  }
  func.func @transform_3(%arg0: i32) -> (i32, i32) {
    %c0_i32 = arith.constant 0 : i32
    %c0_i32_0 = arith.constant 0 : i32
    %c0_i32_1 = arith.constant 0 : i32
    return %c0_i32, %c0_i32_0 : i32, i32
  }
}

</mosaic_0001>

<llo_original>
// kernel: sru_formula_cell_forward.6
$region0: #{sru_formula_cell_forward.6}
  #allocation0 [shape = 'u32[]', space=smem, size = 0x4, offset = 0x4, fixed_abs, tag = 'smem constant byte address 0x4 - core index']
  #allocation1 [shape = 'u32[144,128]{1,0:T(1,128)}', space=vmem, size = 0x12000, scoped, tag = 'internal scratch']
  %s0 = inlined_call_operand.vmem [shape: f32[32,32], index: 0, kind: input, shape index: {}]
  %s1 = inlined_call_operand.vmem [shape: f32[32,128], index: 1, kind: input, shape index: {}]
  %s2 = inlined_call_operand.vmem [shape: f32[1,128], index: 2, kind: input, shape index: {}]
  %s3 = inlined_call_operand.vmem [shape: f32[32,128], index: 3, kind: output, shape index: {}]
  %s4 = sld [smem:[#allocation0]]
  $region22: #{sru_formula_cell_forward.6} parent=0
    _
  %s6 = ssub.s32 1, %s4
  %s7 = scalar_select 0, %s6, %s4
  // Predicated region
  $region2: #{sru_formula_cell_forward.6} parent=0 // pred_check
    _
  $region3: #{sru_formula_cell_forward.6} parent=0 // pred_check_branch
    %9 = sbr.rel (0) target = $region5
  $region4: #{sru_formula_cell_forward.6} parent=0 // pred_region
    _
  $region5: #{sru_formula_cell_forward.6} parent=0 // pred_fallthru
    _
  // Predicated region
  $region6: #{sru_formula_cell_forward.6} parent=0 // pred_check
    _
  $region7: #{sru_formula_cell_forward.6} parent=0 // pred_check_branch
    %11 = sbr.rel (0) target = $region9
  $region8: #{sru_formula_cell_forward.6} parent=0 // pred_region
    _
  $region9: #{sru_formula_cell_forward.6} parent=0 // pred_fallthru
    _
  // Predicated region
  $region10: #{sru_formula_cell_forward.6} parent=0 // pred_check
    _
  $region11: #{sru_formula_cell_forward.6} parent=0 // pred_check_branch
    %13 = sbr.rel (0) target = $region13
  $region12: #{sru_formula_cell_forward.6} parent=0 // pred_region
    _
  $region13: #{sru_formula_cell_forward.6} parent=0 // pred_fallthru
    _
  %v14 = vld [vmem:[%s0] sm:$0xff]
  %v15 = vld [vmem:[%s0 + $0x8] sm:$0xff]
  %v16 = vld [vmem:[%s0 + $0x10] sm:$0xff]
  %v17 = vld [vmem:[%s0 + $0x18] sm:$0xff]
  %v18 = vld [vmem:[%s1] sm:$0xff]
  %v19 = vld [vmem:[%s1 + $0x8] sm:$0xff]
  %v20 = vld [vmem:[%s1 + $0x10] sm:$0xff]
  %v21 = vld [vmem:[%s1 + $0x18] sm:$0xff]
  %v22 = vld [vmem:[%s2] sm:$0x1]
  %v24 = vlaneseq
  %v25 = vshrl.u32 %v24, 7
  %v26 = vsub.s32 0, %v25
  %v27 = vrot.slane %v22, %v26
  %vm29 = vcmask 261120
  %v31 = vsel %vm29, %v14, 0
  %v34 = vsel %vm29, %v15, 0
  %v37 = vsel %vm29, %v16, 0
  %v40 = vsel %vm29, %v17, 0
  %42 = vmatprep.subr.mxu0 0.0
  %43 = vmatpush1.msra.mxu0 0.0
  %44 = vmatprep.subr.mxu0 0.0
  %45 = vmatpush1.msra.mxu0 0.0
  %46 = vmatprep.subr.mxu0 0.0
  %47 = vmatpush1.msra.mxu0 0.0
  %48 = vmatprep.subr.mxu0 0.0
  %49 = vmatpush1.msra.mxu0 0.0
  %50 = vmatprep.subr.mxu0 0.0
  %51 = vmatpush1.msra.mxu0 0.0
  %52 = vmatprep.subr.mxu0 0.0
  %53 = vmatpush1.msra.mxu0 0.0
  %54 = vmatprep.subr.mxu0 0.0
  %55 = vmatpush1.msra.mxu0 0.0
  %56 = vmatprep.subr.mxu0 0.0
  %57 = vmatpush1.msra.mxu0 0.0
  %58 = vmatprep.subr.mxu0 0.0
  %59 = vmatpush1.msra.mxu0 0.0
  %60 = vmatprep.subr.mxu0 0.0
  %61 = vmatpush1.msra.mxu0 0.0
  %62 = vmatprep.subr.mxu0 0.0
  %63 = vmatpush1.msra.mxu0 0.0
  %64 = vmatprep.subr.mxu0 0.0
  %65 = vmatpush1.msra.mxu0 0.0
  %66 = vmatprep.subr.mxu0 0.0
  %67 = vmatpush1.msra.mxu0 %v21
  %68 = vmatprep.subr.mxu0 0.0
  %69 = vmatpush1.msra.mxu0 %v20
  %70 = vmatprep.subr.mxu0 0.0
  %71 = vmatpush1.msra.mxu0 %v19
  %72 = vmatprep.subr.mxu0 0.0
  %73 = vmatpush1.msra.mxu0 %v18
  %74 = vmatprep.subr.mxu0 0.0
  %75 = vmatpush2.msra.mxu0 0.0
  %76 = vmatprep.subr.mxu0 0.0
  %77 = vmatpush2.msra.mxu0 0.0
  %78 = vmatprep.subr.mxu0 0.0
  %79 = vmatpush2.msra.mxu0 0.0
  %80 = vmatprep.subr.mxu0 0.0
  %81 = vmatpush2.msra.mxu0 0.0
  %82 = vmatprep.subr.mxu0 0.0
  %83 = vmatpush2.msra.mxu0 0.0
  %84 = vmatprep.subr.mxu0 0.0
  %85 = vmatpush2.msra.mxu0 0.0
  %86 = vmatprep.subr.mxu0 0.0
  %87 = vmatpush2.msra.mxu0 0.0
  %88 = vmatprep.subr.mxu0 0.0
  %89 = vmatpush2.msra.mxu0 0.0
  %90 = vmatprep.subr.mxu0 0.0
  %91 = vmatpush2.msra.mxu0 0.0
  %92 = vmatprep.subr.mxu0 0.0
  %93 = vmatpush2.msra.mxu0 0.0
  %94 = vmatprep.subr.mxu0 0.0
  %95 = vmatpush2.msra.mxu0 0.0
  %96 = vmatprep.subr.mxu0 0.0
  %97 = vmatpush2.msra.mxu0 0.0
  %98 = vmatprep.subr.mxu0 0.0
  %99 = vmatpush2.msra.mxu0 0.0
  %100 = vmatprep.subr.mxu0 0.0
  %101 = vmatpush2.msra.mxu0 0.0
  %102 = vmatprep.subr.mxu0 0.0
  %103 = vmatpush2.msra.mxu0 0.0
  %104 = vmatprep.subr.mxu0 0.0
  %105 = vmatpush2.msra.mxu0 0.0
  %106 = vmatprep.mubr.f32.mxu0 0.0
  %107 = vmatmul.mubr.f32.gmra.mxu0 %v31
  %v108 = vpop.f32.mrf.mxu0
  %v109 = vadd.f32 %v27, %v108
  %v110 = vpop.f32.mrf.mxu0
  %111 = vmatprep.mubr.f32.mxu0 0.0
  %112 = vmatmul.mubr.f32.gmra.mxu0 %v34
  %v113 = vpop.f32.mrf.mxu0
  %v114 = vadd.f32 %v27, %v113
  %v115 = vpop.f32.mrf.mxu0
  %116 = vmatprep.mubr.f32.mxu0 0.0
  %117 = vmatmul.mubr.f32.gmra.mxu0 %v37
  %v118 = vpop.f32.mrf.mxu0
  %v119 = vadd.f32 %v27, %v118
  %v120 = vpop.f32.mrf.mxu0
  %121 = vmatprep.mubr.f32.mxu0 0.0
  %122 = vmatmul.mubr.f32.gmra.mxu0 %v40
  %v123 = vpop.f32.mrf.mxu0
  %v124 = vadd.f32 %v27, %v123
  %v125 = vpop.f32.mrf.mxu0
  %126 = vdwg.mxu0
  %v127 = vlaneseq
  %v128 = vand.u32 %v127, 127
  %vm129 = vcmp.ge.s32.totalorder %v128, 32
  %vm130 = vcmp.lt.s32.totalorder %v128, 96
  %vm131 = vmand %vm129, %vm130
  %v132 = vxor.u32 %v109, 2147483648
  %v133 = vxor.u32 %v114, 2147483648
  %v134 = vxor.u32 %v119, 2147483648
  %v135 = vxor.u32 %v124, 2147483648
  %v136 = vmul.f32 %v132, 1.442695
  %v137 = vpow.pop %v136
  %v138 = vmul.f32 %v133, 1.442695
  %v139 = vpow.pop %v138
  %v140 = vmul.f32 %v134, 1.442695
  %v141 = vpow.pop %v140
  %v142 = vmul.f32 %v135, 1.442695
  %v143 = vpow.pop %v142
  %v144 = vadd.f32 %v137, 1.0
  %v145 = vadd.f32 %v139, 1.0
  %v146 = vadd.f32 %v141, 1.0
  %v147 = vadd.f32 %v143, 1.0
  %v148 = vrcp.pop %v144
  %v149 = vmul.f32 1.0, %v148
  %v150 = vrcp.pop %v145
  %v151 = vmul.f32 1.0, %v150
  %v152 = vrcp.pop %v146
  %v153 = vmul.f32 1.0, %v152
  %v154 = vrcp.pop %v147
  %v155 = vmul.f32 1.0, %v154
  %v156 = vsel %vm131, %v149, %v109
  %v157 = vsel %vm131, %v151, %v114
  %v158 = vsel %vm131, %v153, %v119
  %v159 = vsel %vm131, %v155, %v124
  %160 = vst [vmem:[%s3] sm:$0xff] %v156
  %161 = vst [vmem:[%s3 + $0x8] sm:$0xff] %v157
  %162 = vst [vmem:[%s3 + $0x10] sm:$0xff] %v158
  %163 = vst [vmem:[%s3 + $0x18] sm:$0xff] %v159
  // Predicated region
  $region14: #{sru_formula_cell_forward.6} parent=0 // pred_check
    _
  $region15: #{sru_formula_cell_forward.6} parent=0 // pred_check_branch
    %165 = sbr.rel (0) target = $region17
  $region16: #{sru_formula_cell_forward.6} parent=0 // pred_region
    _
  $region17: #{sru_formula_cell_forward.6} parent=0 // pred_fallthru
    _
  // Predicated region
  $region18: #{sru_formula_cell_forward.6} parent=0 // pred_check
    _
  $region19: #{sru_formula_cell_forward.6} parent=0 // pred_check_branch
    %167 = sbr.rel (0) target = $region21
  $region20: #{sru_formula_cell_forward.6} parent=0 // pred_region
    _
  $region21: #{sru_formula_cell_forward.6} parent=0 // pred_fallthru
    _

// kernel: sru_formula_cell_forward.4
$region0: #{sru_formula_cell_forward.4}
  #allocation0 [shape = 'u32[]', space=smem, size = 0x4, offset = 0x4, fixed_abs, tag = 'smem constant byte address 0x4 - core index']
  #allocation1 [shape = 'u32[144,128]{1,0:T(1,128)}', space=vmem, size = 0x12000, scoped, tag = 'internal scratch']
  %s0 = inlined_call_operand.vmem [shape: f32[32,16], index: 0, kind: input, shape index: {}]
  %s1 = inlined_call_operand.vmem [shape: f32[16,128], index: 1, kind: input, shape index: {}]
  %s2 = inlined_call_operand.vmem [shape: f32[1,128], index: 2, kind: input, shape index: {}]
  %s3 = inlined_call_operand.vmem [shape: f32[32,128], index: 3, kind: output, shape index: {}]
  %s4 = sld [smem:[#allocation0]]
  $region22: #{sru_formula_cell_forward.4} parent=0
    _
  %s6 = ssub.s32 1, %s4
  %s7 = scalar_select 0, %s6, %s4
  // Predicated region
  $region2: #{sru_formula_cell_forward.4} parent=0 // pred_check
    _
  $region3: #{sru_formula_cell_forward.4} parent=0 // pred_check_branch
    %9 = sbr.rel (0) target = $region5
  $region4: #{sru_formula_cell_forward.4} parent=0 // pred_region
    _
  $region5: #{sru_formula_cell_forward.4} parent=0 // pred_fallthru
    _
  // Predicated region
  $region6: #{sru_formula_cell_forward.4} parent=0 // pred_check
    _
  $region7: #{sru_formula_cell_forward.4} parent=0 // pred_check_branch
    %11 = sbr.rel (0) target = $region9
  $region8: #{sru_formula_cell_forward.4} parent=0 // pred_region
    _
  $region9: #{sru_formula_cell_forward.4} parent=0 // pred_fallthru
    _
  // Predicated region
  $region10: #{sru_formula_cell_forward.4} parent=0 // pred_check
    _
  $region11: #{sru_formula_cell_forward.4} parent=0 // pred_check_branch
    %13 = sbr.rel (0) target = $region13
  $region12: #{sru_formula_cell_forward.4} parent=0 // pred_region
    _
  $region13: #{sru_formula_cell_forward.4} parent=0 // pred_fallthru
    _
  %v14 = vld [vmem:[%s0] sm:$0xff]
  %v15 = vld [vmem:[%s0 + $0x8] sm:$0xff]
  %v16 = vld [vmem:[%s0 + $0x10] sm:$0xff]
  %v17 = vld [vmem:[%s0 + $0x18] sm:$0xff]
  %v18 = vld [vmem:[%s1] sm:$0xff]
  %v19 = vld [vmem:[%s1 + $0x8] sm:$0xff]
  %v20 = vld [vmem:[%s2] sm:$0x1]
  %v22 = vlaneseq
  %v23 = vshrl.u32 %v22, 7
  %v24 = vsub.s32 0, %v23
  %v25 = vrot.slane %v20, %v24
  %vm27 = vcmask 130048
  %v29 = vsel %vm27, %v14, 0
  %v32 = vsel %vm27, %v15, 0
  %v35 = vsel %vm27, %v16, 0
  %v38 = vsel %vm27, %v17, 0
  %40 = vmatprep.subr.mxu0 0.0
  %41 = vmatpush1.msra.mxu0 0.0
  %42 = vmatprep.subr.mxu0 0.0
  %43 = vmatpush1.msra.mxu0 0.0
  %44 = vmatprep.subr.mxu0 0.0
  %45 = vmatpush1.msra.mxu0 0.0
  %46 = vmatprep.subr.mxu0 0.0
  %47 = vmatpush1.msra.mxu0 0.0
  %48 = vmatprep.subr.mxu0 0.0
  %49 = vmatpush1.msra.mxu0 0.0
  %50 = vmatprep.subr.mxu0 0.0
  %51 = vmatpush1.msra.mxu0 0.0
  %52 = vmatprep.subr.mxu0 0.0
  %53 = vmatpush1.msra.mxu0 0.0
  %54 = vmatprep.subr.mxu0 0.0
  %55 = vmatpush1.msra.mxu0 0.0
  %56 = vmatprep.subr.mxu0 0.0
  %57 = vmatpush1.msra.mxu0 0.0
  %58 = vmatprep.subr.mxu0 0.0
  %59 = vmatpush1.msra.mxu0 0.0
  %60 = vmatprep.subr.mxu0 0.0
  %61 = vmatpush1.msra.mxu0 0.0
  %62 = vmatprep.subr.mxu0 0.0
  %63 = vmatpush1.msra.mxu0 0.0
  %64 = vmatprep.subr.mxu0 0.0
  %65 = vmatpush1.msra.mxu0 0.0
  %66 = vmatprep.subr.mxu0 0.0
  %67 = vmatpush1.msra.mxu0 0.0
  %68 = vmatprep.subr.mxu0 0.0
  %69 = vmatpush1.msra.mxu0 %v19
  %70 = vmatprep.subr.mxu0 0.0
  %71 = vmatpush1.msra.mxu0 %v18
  %72 = vmatprep.subr.mxu0 0.0
  %73 = vmatpush2.msra.mxu0 0.0
  %74 = vmatprep.subr.mxu0 0.0
  %75 = vmatpush2.msra.mxu0 0.0
  %76 = vmatprep.subr.mxu0 0.0
  %77 = vmatpush2.msra.mxu0 0.0
  %78 = vmatprep.subr.mxu0 0.0
  %79 = vmatpush2.msra.mxu0 0.0
  %80 = vmatprep.subr.mxu0 0.0
  %81 = vmatpush2.msra.mxu0 0.0
  %82 = vmatprep.subr.mxu0 0.0
  %83 = vmatpush2.msra.mxu0 0.0
  %84 = vmatprep.subr.mxu0 0.0
  %85 = vmatpush2.msra.mxu0 0.0
  %86 = vmatprep.subr.mxu0 0.0
  %87 = vmatpush2.msra.mxu0 0.0
  %88 = vmatprep.subr.mxu0 0.0
  %89 = vmatpush2.msra.mxu0 0.0
  %90 = vmatprep.subr.mxu0 0.0
  %91 = vmatpush2.msra.mxu0 0.0
  %92 = vmatprep.subr.mxu0 0.0
  %93 = vmatpush2.msra.mxu0 0.0
  %94 = vmatprep.subr.mxu0 0.0
  %95 = vmatpush2.msra.mxu0 0.0
  %96 = vmatprep.subr.mxu0 0.0
  %97 = vmatpush2.msra.mxu0 0.0
  %98 = vmatprep.subr.mxu0 0.0
  %99 = vmatpush2.msra.mxu0 0.0
  %100 = vmatprep.subr.mxu0 0.0
  %101 = vmatpush2.msra.mxu0 0.0
  %102 = vmatprep.subr.mxu0 0.0
  %103 = vmatpush2.msra.mxu0 0.0
  %104 = vmatprep.mubr.f32.mxu0 0.0
  %105 = vmatmul.mubr.f32.gmra.mxu0 %v29
  %v106 = vpop.f32.mrf.mxu0
  %v107 = vadd.f32 %v25, %v106
  %v108 = vpop.f32.mrf.mxu0
  %109 = vmatprep.mubr.f32.mxu0 0.0
  %110 = vmatmul.mubr.f32.gmra.mxu0 %v32
  %v111 = vpop.f32.mrf.mxu0
  %v112 = vadd.f32 %v25, %v111
  %v113 = vpop.f32.mrf.mxu0
  %114 = vmatprep.mubr.f32.mxu0 0.0
  %115 = vmatmul.mubr.f32.gmra.mxu0 %v35
  %v116 = vpop.f32.mrf.mxu0
  %v117 = vadd.f32 %v25, %v116
  %v118 = vpop.f32.mrf.mxu0
  %119 = vmatprep.mubr.f32.mxu0 0.0
  %120 = vmatmul.mubr.f32.gmra.mxu0 %v38
  %v121 = vpop.f32.mrf.mxu0
  %v122 = vadd.f32 %v25, %v121
  %v123 = vpop.f32.mrf.mxu0
  %124 = vdwg.mxu0
  %v125 = vlaneseq
  %v126 = vand.u32 %v125, 127
  %vm127 = vcmp.ge.s32.totalorder %v126, 32
  %vm128 = vcmp.lt.s32.totalorder %v126, 96
  %vm129 = vmand %vm127, %vm128
  %v130 = vxor.u32 %v107, 2147483648
  %v131 = vxor.u32 %v112, 2147483648
  %v132 = vxor.u32 %v117, 2147483648
  %v133 = vxor.u32 %v122, 2147483648
  %v134 = vmul.f32 %v130, 1.442695
  %v135 = vpow.pop %v134
  %v136 = vmul.f32 %v131, 1.442695
  %v137 = vpow.pop %v136
  %v138 = vmul.f32 %v132, 1.442695
  %v139 = vpow.pop %v138
  %v140 = vmul.f32 %v133, 1.442695
  %v141 = vpow.pop %v140
  %v142 = vadd.f32 %v135, 1.0
  %v143 = vadd.f32 %v137, 1.0
  %v144 = vadd.f32 %v139, 1.0
  %v145 = vadd.f32 %v141, 1.0
  %v146 = vrcp.pop %v142
  %v147 = vmul.f32 1.0, %v146
  %v148 = vrcp.pop %v143
  %v149 = vmul.f32 1.0, %v148
  %v150 = vrcp.pop %v144
  %v151 = vmul.f32 1.0, %v150
  %v152 = vrcp.pop %v145
  %v153 = vmul.f32 1.0, %v152
  %v154 = vsel %vm129, %v147, %v107
  %v155 = vsel %vm129, %v149, %v112
  %v156 = vsel %vm129, %v151, %v117
  %v157 = vsel %vm129, %v153, %v122
  %158 = vst [vmem:[%s3] sm:$0xff] %v154
  %159 = vst [vmem:[%s3 + $0x8] sm:$0xff] %v155
  %160 = vst [vmem:[%s3 + $0x10] sm:$0xff] %v156
  %161 = vst [vmem:[%s3 + $0x18] sm:$0xff] %v157
  // Predicated region
  $region14: #{sru_formula_cell_forward.4} parent=0 // pred_check
    _
  $region15: #{sru_formula_cell_forward.4} parent=0 // pred_check_branch
    %163 = sbr.rel (0) target = $region17
  $region16: #{sru_formula_cell_forward.4} parent=0 // pred_region
    _
  $region17: #{sru_formula_cell_forward.4} parent=0 // pred_fallthru
    _
  // Predicated region
  $region18: #{sru_formula_cell_forward.4} parent=0 // pred_check
    _
  $region19: #{sru_formula_cell_forward.4} parent=0 // pred_check_branch
    %165 = sbr.rel (0) target = $region21
  $region20: #{sru_formula_cell_forward.4} parent=0 // pred_region
    _
  $region21: #{sru_formula_cell_forward.4} parent=0 // pred_fallthru
    _

// kernel: sru_formula_cell_forward.7
$region0: #{sru_formula_cell_forward.7}
  #allocation0 [shape = 'u32[]', space=smem, size = 0x4, offset = 0x4, fixed_abs, tag = 'smem constant byte address 0x4 - core index']
  #allocation1 [shape = 'u32[144,128]{1,0:T(1,128)}', space=vmem, size = 0x12000, scoped, tag = 'internal scratch']
  #allocation2 [shape = 'f32[4,32]{1,0:T(4,128)}', space=vmem, size = 0x800, scoped, tag = 'scratch operand']
  %s0 = inlined_call_operand.vmem [shape: f32[8,4,128], index: 0, kind: input, shape index: {}]
  %s1 = inlined_call_operand.vmem [shape: f32[4,32], index: 1, kind: input, shape index: {}]
  %s2 = inlined_call_operand.hbm [shape: f32[8,4,32], index: 2, kind: output, shape index: {0}]
  %s3 = inlined_call_operand.hbm [shape: f32[4,32], index: 3, kind: output, shape index: {1}]
  %4 = xla_tuple %s2, %s3
  %s5 = sld [smem:[#allocation0]]
  $region34: #{sru_formula_cell_forward.7} parent=0
    _
  %s7 = ssub.s32 1, %s5
  %s8 = scalar_select 0, %s7, %s5
  $region1: #{sru_formula_cell_forward.7} parent=0
    #allocation3 [shape = 'u8[16384]{0}', space=vmem, size = 0x4000, scoped, tag = 'output window, operand 0, single buffered']
    #allocation4 [shape = 's32[1]{0}', space=sflag, size = 0x4, scoped, tag = 'scoped memory for sru_formula_cell_forward.7']
    #allocation5 [shape = 'u8[2048]{0}', space=vmem, size = 0x800, scoped, tag = 'output window, operand 1, single buffered']
    #allocation6 [shape = 's32[1]{0}', space=sflag, size = 0x4, scoped, tag = 'scoped memory for sru_formula_cell_forward.7']
    %9 = vsyncpa [#allocation4], 0
    %10 = vsyncpa [#allocation6], 0
    // Predicated region
    $region2: #{sru_formula_cell_forward.7} parent=1 // pred_check
      _
    $region3: #{sru_formula_cell_forward.7} parent=1 // pred_check_branch
      %12 = sbr.rel (0) target = $region5
    $region4: #{sru_formula_cell_forward.7} parent=1 // pred_region
      _
    $region5: #{sru_formula_cell_forward.7} parent=1 // pred_fallthru
      _
    // Predicated region
    $region6: #{sru_formula_cell_forward.7} parent=1 // pred_check
      _
    $region7: #{sru_formula_cell_forward.7} parent=1 // pred_check_branch
      %14 = sbr.rel (0) target = $region9
    $region8: #{sru_formula_cell_forward.7} parent=1 // pred_region
      _
    $region9: #{sru_formula_cell_forward.7} parent=1 // pred_fallthru
      _
    %p15 = scmp.eq.s32.totalorder 0, 0
    // Predicated region
    $region10: #{sru_formula_cell_forward.7} parent=1 // pred_check
      %p16 = pneg %p15
    $region11: #{sru_formula_cell_forward.7} parent=1 // pred_check_branch
      %18 = sbr.rel (%p16) target = $region13
    $region12: #{sru_formula_cell_forward.7} parent=1 // pred_region
      %v19 = vld [vmem:[%s1] sm:$0xf]
      %vm20 = vcmask 257024
      %21 = vst.msk [vmem:[#allocation2] sm:$0xf] %vm20, %v19
    $region13: #{sru_formula_cell_forward.7} parent=1 // pred_fallthru
      _
    %v22 = vld [vmem:[#allocation2] sm:$0xf]
    %v23 = vld [vmem:[%s0] sm:$0xf]
    %25 = vrot.lane.b32.xlu0 %v22, 32
    %v26 = vpop.permute.xlu0 %25
    %v28 = vmul.f32 %v23, %v26
    %v29 = vsub.f32 1.0, %v23
    %31 = vrot.lane.b32.xlu0 %v23, 32
    %v32 = vpop.permute.xlu0 %31
    %v34 = vmul.f32 %v29, %v32
    %v35 = vadd.f32 %v28, %v34
    %v36 = vtanh.pop %v35
    %38 = vrot.lane.b32.xlu0 %v36, 32
    %v39 = vpop.permute.xlu0 %38
    %v41 = vmul.f32 %v23, %v39
    %42 = vrot.lane.b32.xlu0 %v23, 96
    %v43 = vpop.permute.xlu0 %42
    %v45 = vmul.f32 %v29, %v43
    %v46 = vadd.f32 %v41, %v45
    %48 = vrot.lane.b32.xlu0 %v46, 64
    %v49 = vpop.permute.xlu0 %48
    %vm51 = vcmask 257024
    %52 = vst.msk [vmem:[#allocation3] sm:$0xf] %vm51, %v49
    %s53 = scalar_lea.vmem %s0, 4
    %v54 = vld [vmem:[%s53] sm:$0xf]
    %v55 = vmul.f32 %v54, %v35
    %v56 = vsub.f32 1.0, %v54
    %58 = vrot.lane.b32.xlu0 %v54, 32
    %v59 = vpop.permute.xlu0 %58
    %v61 = vmul.f32 %v56, %v59
    %v62 = vadd.f32 %v55, %v61
    %v63 = vtanh.pop %v62
    %65 = vrot.lane.b32.xlu0 %v63, 32
    %v66 = vpop.permute.xlu0 %65
    %v68 = vmul.f32 %v54, %v66
    %69 = vrot.lane.b32.xlu0 %v54, 96
    %v70 = vpop.permute.xlu0 %69
    %v72 = vmul.f32 %v56, %v70
    %v73 = vadd.f32 %v68, %v72
    %75 = vrot.lane.b32.xlu0 %v73, 64
    %v76 = vpop.permute.xlu0 %75
    %s78 = scalar_lea.vmem [#allocation3], 4
    %79 = vst.msk [vmem:[%s78] sm:$0xf] %vm51, %v76
    %s80 = scalar_lea.vmem %s0, 8
    %v81 = vld [vmem:[%s80] sm:$0xf]
    %v82 = vmul.f32 %v81, %v62
    %v83 = vsub.f32 1.0, %v81
    %85 = vrot.lane.b32.xlu0 %v81, 32
    %v86 = vpop.permute.xlu0 %85
    %v88 = vmul.f32 %v83, %v86
    %v89 = vadd.f32 %v82, %v88
    %v90 = vtanh.pop %v89
    %92 = vrot.lane.b32.xlu0 %v90, 32
    %v93 = vpop.permute.xlu0 %92
    %v95 = vmul.f32 %v81, %v93
    %96 = vrot.lane.b32.xlu0 %v81, 96
    %v97 = vpop.permute.xlu0 %96
    %v99 = vmul.f32 %v83, %v97
    %v100 = vadd.f32 %v95, %v99
    %102 = vrot.lane.b32.xlu0 %v100, 64
    %v103 = vpop.permute.xlu0 %102
    %s105 = scalar_lea.vmem [#allocation3], 8
    %106 = vst.msk [vmem:[%s105] sm:$0xf] %vm51, %v103
    %s107 = scalar_lea.vmem %s0, 12
    %v108 = vld [vmem:[%s107] sm:$0xf]
    %v109 = vmul.f32 %v108, %v89
    %v110 = vsub.f32 1.0, %v108
    %112 = vrot.lane.b32.xlu0 %v108, 32
    %v113 = vpop.permute.xlu0 %112
    %v115 = vmul.f32 %v110, %v113
    %v116 = vadd.f32 %v109, %v115
    %v117 = vtanh.pop %v116
    %119 = vrot.lane.b32.xlu0 %v117, 32
    %v120 = vpop.permute.xlu0 %119
    %v122 = vmul.f32 %v108, %v120
    %123 = vrot.lane.b32.xlu0 %v108, 96
    %v124 = vpop.permute.xlu0 %123
    %v126 = vmul.f32 %v110, %v124
    %v127 = vadd.f32 %v122, %v126
    %129 = vrot.lane.b32.xlu0 %v127, 64
    %v130 = vpop.permute.xlu0 %129
    %s132 = scalar_lea.vmem [#allocation3], 12
    %133 = vst.msk [vmem:[%s132] sm:$0xf] %vm51, %v130
    %s134 = scalar_lea.vmem %s0, 16
    %v135 = vld [vmem:[%s134] sm:$0xf]
    %v136 = vmul.f32 %v135, %v116
    %v137 = vsub.f32 1.0, %v135
    %139 = vrot.lane.b32.xlu0 %v135, 32
    %v140 = vpop.permute.xlu0 %139
    %v142 = vmul.f32 %v137, %v140
    %v143 = vadd.f32 %v136, %v142
    %v144 = vtanh.pop %v143
    %146 = vrot.lane.b32.xlu0 %v144, 32
    %v147 = vpop.permute.xlu0 %146
    %v149 = vmul.f32 %v135, %v147
    %150 = vrot.lane.b32.xlu0 %v135, 96
    %v151 = vpop.permute.xlu0 %150
    %v153 = vmul.f32 %v137, %v151
    %v154 = vadd.f32 %v149, %v153
    %156 = vrot.lane.b32.xlu0 %v154, 64
    %v157 = vpop.permute.xlu0 %156
    %s159 = scalar_lea.vmem [#allocation3], 16
    %160 = vst.msk [vmem:[%s159] sm:$0xf] %vm51, %v157
    %s161 = scalar_lea.vmem %s0, 20
    %v162 = vld [vmem:[%s161] sm:$0xf]
    %v163 = vmul.f32 %v162, %v143
    %v164 = vsub.f32 1.0, %v162
    %166 = vrot.lane.b32.xlu0 %v162, 32
    %v167 = vpop.permute.xlu0 %166
    %v169 = vmul.f32 %v164, %v167
    %v170 = vadd.f32 %v163, %v169
    %v171 = vtanh.pop %v170
    %173 = vrot.lane.b32.xlu0 %v171, 32
    %v174 = vpop.permute.xlu0 %173
    %v176 = vmul.f32 %v162, %v174
    %177 = vrot.lane.b32.xlu0 %v162, 96
    %v178 = vpop.permute.xlu0 %177
    %v180 = vmul.f32 %v164, %v178
    %v181 = vadd.f32 %v176, %v180
    %183 = vrot.lane.b32.xlu0 %v181, 64
    %v184 = vpop.permute.xlu0 %183
    %s186 = scalar_lea.vmem [#allocation3], 20
    %187 = vst.msk [vmem:[%s186] sm:$0xf] %vm51, %v184
    %s188 = scalar_lea.vmem %s0, 24
    %v189 = vld [vmem:[%s188] sm:$0xf]
    %v190 = vmul.f32 %v189, %v170
    %v191 = vsub.f32 1.0, %v189
    %193 = vrot.lane.b32.xlu0 %v189, 32
    %v194 = vpop.permute.xlu0 %193
    %v196 = vmul.f32 %v191, %v194
    %v197 = vadd.f32 %v190, %v196
    %v198 = vtanh.pop %v197
    %200 = vrot.lane.b32.xlu0 %v198, 32
    %v201 = vpop.permute.xlu0 %200
    %v203 = vmul.f32 %v189, %v201
    %204 = vrot.lane.b32.xlu0 %v189, 96
    %v205 = vpop.permute.xlu0 %204
    %v207 = vmul.f32 %v191, %v205
    %v208 = vadd.f32 %v203, %v207
    %210 = vrot.lane.b32.xlu0 %v208, 64
    %v211 = vpop.permute.xlu0 %210
    %s213 = scalar_lea.vmem [#allocation3], 24
    %214 = vst.msk [vmem:[%s213] sm:$0xf] %vm51, %v211
    %s215 = scalar_lea.vmem %s0, 28
    %v216 = vld [vmem:[%s215] sm:$0xf]
    %v217 = vmul.f32 %v216, %v197
    %v218 = vsub.f32 1.0, %v216
    %220 = vrot.lane.b32.xlu0 %v216, 32
    %v221 = vpop.permute.xlu0 %220
    %v223 = vmul.f32 %v218, %v221
    %v224 = vadd.f32 %v217, %v223
    %v225 = vtanh.pop %v224
    %227 = vrot.lane.b32.xlu0 %v225, 32
    %v228 = vpop.permute.xlu0 %227
    %v230 = vmul.f32 %v216, %v228
    %231 = vrot.lane.b32.xlu0 %v216, 96
    %v232 = vpop.permute.xlu0 %231
    %v234 = vmul.f32 %v218, %v232
    %v235 = vadd.f32 %v230, %v234
    %237 = vrot.lane.b32.xlu0 %v235, 64
    %v238 = vpop.permute.xlu0 %237
    %s240 = scalar_lea.vmem [#allocation3], 28
    %241 = vst.msk [vmem:[%s240] sm:$0xf] %vm51, %v238
    %243 = vrot.lane.b32.xlu0 %v224, 96
    %v244 = vpop.permute.xlu0 %243
    %246 = vst.msk [vmem:[#allocation2] sm:$0xf] %vm51, %v244
    // Predicated region
    $region14: #{sru_formula_cell_forward.7} parent=1 // pred_check
      %p247 = pneg %p15
    $region15: #{sru_formula_cell_forward.7} parent=1 // pred_check_branch
      %249 = sbr.rel (%p247) target = $region17
    $region16: #{sru_formula_cell_forward.7} parent=1 // pred_region
      %250 = vst.msk [vmem:[#allocation5] sm:$0xf] %vm51, %v244
    $region17: #{sru_formula_cell_forward.7} parent=1 // pred_fallthru
      _
    // Predicated region
    $region18: #{sru_formula_cell_forward.7} parent=1 // pred_check
      _
    $region19: #{sru_formula_cell_forward.7} parent=1 // pred_check_branch
      %252 = sbr.rel (0) target = $region21
    $region20: #{sru_formula_cell_forward.7} parent=1 // pred_region
      %s254 = ssub.s32 512, 512
      %255 = vsyncadd [#allocation4], %s254
      %s256 = sshll.u32 [#allocation3], 4
      %s257 = int_to_ptr.vmem [resolvable:$true] %s256
      %262 = dma.vmem_to_hbm [thread:$0]  %s257, 512, %s2, [#allocation4], 64, 64, 4
    $region21: #{sru_formula_cell_forward.7} parent=1 // pred_fallthru
      _
    // Predicated region
    $region22: #{sru_formula_cell_forward.7} parent=1 // pred_check
      _
    $region23: #{sru_formula_cell_forward.7} parent=1 // pred_check_branch
      %264 = sbr.rel (0) target = $region25
    $region24: #{sru_formula_cell_forward.7} parent=1 // pred_region
      %s266 = ssub.s32 64, 64
      %267 = vsyncadd [#allocation6], %s266
      %s269 = sshll.u32 [#allocation5], 4
      %s270 = int_to_ptr.vmem [resolvable:$true] %s269
      %272 = dma.vmem_to_hbm [thread:$0]  %s270, 64, %s3, [#allocation6]
    $region25: #{sru_formula_cell_forward.7} parent=1 // pred_fallthru
      _
    // Predicated region
    $region26: #{sru_formula_cell_forward.7} parent=1 // pred_check
      _
    $region27: #{sru_formula_cell_forward.7} parent=1 // pred_check_branch
      %274 = sbr.rel (0) target = $region29
    $region28: #{sru_formula_cell_forward.7} parent=1 // pred_region
      %275 = dma.done [#allocation4], 512
    $region29: #{sru_formula_cell_forward.7} parent=1 // pred_fallthru
      _
    // Predicated region
    $region30: #{sru_formula_cell_forward.7} parent=1 // pred_check
      _
    $region31: #{sru_formula_cell_forward.7} parent=1 // pred_check_branch
      %277 = sbr.rel (0) target = $region33
    $region32: #{sru_formula_cell_forward.7} parent=1 // pred_region
      %278 = dma.done [#allocation6], 64
    $region33: #{sru_formula_cell_forward.7} parent=1 // pred_fallthru
      _
    %279 = vsyncpa [#allocation4], 1
    %280 = vsyncpa [#allocation6], 1

// kernel: sru_formula_cell_forward.5
$region0: #{sru_formula_cell_forward.5}
  #allocation0 [shape = 'u32[]', space=smem, size = 0x4, offset = 0x4, fixed_abs, tag = 'smem constant byte address 0x4 - core index']
  #allocation1 [shape = 'u32[144,128]{1,0:T(1,128)}', space=vmem, size = 0x12000, scoped, tag = 'internal scratch']
  #allocation2 [shape = 'f32[4,32]{1,0:T(4,128)}', space=vmem, size = 0x800, scoped, tag = 'scratch operand']
  %s0 = inlined_call_operand.vmem [shape: f32[8,4,128], index: 0, kind: input, shape index: {}]
  %s1 = inlined_call_operand.vmem [shape: f32[4,32], index: 1, kind: input, shape index: {}]
  %s2 = inlined_call_operand.vmem [shape: f32[8,4,32], index: 2, kind: output, shape index: {0}]
  %s3 = inlined_call_operand.hbm [shape: f32[4,32], index: 3, kind: output, shape index: {1}]
  %4 = xla_tuple %s2, %s3
  %s5 = sld [smem:[#allocation0]]
  $region34: #{sru_formula_cell_forward.5} parent=0
    _
  %s7 = ssub.s32 1, %s5
  %s8 = scalar_select 0, %s7, %s5
  $region1: #{sru_formula_cell_forward.5} parent=0
    #allocation3 [shape = 'u8[2048]{0}', space=vmem, size = 0x800, scoped, tag = 'output window, operand 1, single buffered']
    #allocation4 [shape = 's32[1]{0}', space=sflag, size = 0x4, scoped, tag = 'scoped memory for sru_formula_cell_forward.5']
    %9 = vsyncpa [#allocation4], 0
    // Predicated region
    $region2: #{sru_formula_cell_forward.5} parent=1 // pred_check
      _
    $region3: #{sru_formula_cell_forward.5} parent=1 // pred_check_branch
      %11 = sbr.rel (0) target = $region5
    $region4: #{sru_formula_cell_forward.5} parent=1 // pred_region
      _
    $region5: #{sru_formula_cell_forward.5} parent=1 // pred_fallthru
      _
    // Predicated region
    $region6: #{sru_formula_cell_forward.5} parent=1 // pred_check
      _
    $region7: #{sru_formula_cell_forward.5} parent=1 // pred_check_branch
      %13 = sbr.rel (0) target = $region9
    $region8: #{sru_formula_cell_forward.5} parent=1 // pred_region
      _
    $region9: #{sru_formula_cell_forward.5} parent=1 // pred_fallthru
      _
    %p14 = scmp.eq.s32.totalorder 0, 0
    // Predicated region
    $region10: #{sru_formula_cell_forward.5} parent=1 // pred_check
      %p15 = pneg %p14
    $region11: #{sru_formula_cell_forward.5} parent=1 // pred_check_branch
      %17 = sbr.rel (%p15) target = $region13
    $region12: #{sru_formula_cell_forward.5} parent=1 // pred_region
      %v18 = vld [vmem:[%s1] sm:$0xf]
      %vm19 = vcmask 257024
      %20 = vst.msk [vmem:[#allocation2] sm:$0xf] %vm19, %v18
    $region13: #{sru_formula_cell_forward.5} parent=1 // pred_fallthru
      _
    %v21 = vld [vmem:[#allocation2] sm:$0xf]
    %v22 = vld [vmem:[%s0] sm:$0xf]
    %24 = vrot.lane.b32.xlu0 %v21, 32
    %v25 = vpop.permute.xlu0 %24
    %v27 = vmul.f32 %v22, %v25
    %v28 = vsub.f32 1.0, %v22
    %30 = vrot.lane.b32.xlu0 %v22, 32
    %v31 = vpop.permute.xlu0 %30
    %v33 = vmul.f32 %v28, %v31
    %v34 = vadd.f32 %v27, %v33
    %v35 = vtanh.pop %v34
    %37 = vrot.lane.b32.xlu0 %v35, 32
    %v38 = vpop.permute.xlu0 %37
    %v40 = vmul.f32 %v22, %v38
    %41 = vrot.lane.b32.xlu0 %v22, 96
    %v42 = vpop.permute.xlu0 %41
    %v44 = vmul.f32 %v28, %v42
    %v45 = vadd.f32 %v40, %v44
    %47 = vrot.lane.b32.xlu0 %v45, 64
    %v48 = vpop.permute.xlu0 %47
    %vm50 = vcmask 257024
    %51 = vst.msk [vmem:[%s2] sm:$0xf] %vm50, %v48
    %s52 = scalar_lea.vmem %s0, 4
    %v53 = vld [vmem:[%s52] sm:$0xf]
    %v54 = vmul.f32 %v53, %v34
    %v55 = vsub.f32 1.0, %v53
    %57 = vrot.lane.b32.xlu0 %v53, 32
    %v58 = vpop.permute.xlu0 %57
    %v60 = vmul.f32 %v55, %v58
    %v61 = vadd.f32 %v54, %v60
    %v62 = vtanh.pop %v61
    %64 = vrot.lane.b32.xlu0 %v62, 32
    %v65 = vpop.permute.xlu0 %64
    %v67 = vmul.f32 %v53, %v65
    %68 = vrot.lane.b32.xlu0 %v53, 96
    %v69 = vpop.permute.xlu0 %68
    %v71 = vmul.f32 %v55, %v69
    %v72 = vadd.f32 %v67, %v71
    %74 = vrot.lane.b32.xlu0 %v72, 64
    %v75 = vpop.permute.xlu0 %74
    %s77 = scalar_lea.vmem %s2, 4
    %78 = vst.msk [vmem:[%s77] sm:$0xf] %vm50, %v75
    %s79 = scalar_lea.vmem %s0, 8
    %v80 = vld [vmem:[%s79] sm:$0xf]
    %v81 = vmul.f32 %v80, %v61
    %v82 = vsub.f32 1.0, %v80
    %84 = vrot.lane.b32.xlu0 %v80, 32
    %v85 = vpop.permute.xlu0 %84
    %v87 = vmul.f32 %v82, %v85
    %v88 = vadd.f32 %v81, %v87
    %v89 = vtanh.pop %v88
    %91 = vrot.lane.b32.xlu0 %v89, 32
    %v92 = vpop.permute.xlu0 %91
    %v94 = vmul.f32 %v80, %v92
    %95 = vrot.lane.b32.xlu0 %v80, 96
    %v96 = vpop.permute.xlu0 %95
    %v98 = vmul.f32 %v82, %v96
    %v99 = vadd.f32 %v94, %v98
    %101 = vrot.lane.b32.xlu0 %v99, 64
    %v102 = vpop.permute.xlu0 %101
    %s104 = scalar_lea.vmem %s2, 8
    %105 = vst.msk [vmem:[%s104] sm:$0xf] %vm50, %v102
    %s106 = scalar_lea.vmem %s0, 12
    %v107 = vld [vmem:[%s106] sm:$0xf]
    %v108 = vmul.f32 %v107, %v88
    %v109 = vsub.f32 1.0, %v107
    %111 = vrot.lane.b32.xlu0 %v107, 32
    %v112 = vpop.permute.xlu0 %111
    %v114 = vmul.f32 %v109, %v112
    %v115 = vadd.f32 %v108, %v114
    %v116 = vtanh.pop %v115
    %118 = vrot.lane.b32.xlu0 %v116, 32
    %v119 = vpop.permute.xlu0 %118
    %v121 = vmul.f32 %v107, %v119
    %122 = vrot.lane.b32.xlu0 %v107, 96
    %v123 = vpop.permute.xlu0 %122
    %v125 = vmul.f32 %v109, %v123
    %v126 = vadd.f32 %v121, %v125
    %128 = vrot.lane.b32.xlu0 %v126, 64
    %v129 = vpop.permute.xlu0 %128
    %s131 = scalar_lea.vmem %s2, 12
    %132 = vst.msk [vmem:[%s131] sm:$0xf] %vm50, %v129
    %s133 = scalar_lea.vmem %s0, 16
    %v134 = vld [vmem:[%s133] sm:$0xf]
    %v135 = vmul.f32 %v134, %v115
    %v136 = vsub.f32 1.0, %v134
    %138 = vrot.lane.b32.xlu0 %v134, 32
    %v139 = vpop.permute.xlu0 %138
    %v141 = vmul.f32 %v136, %v139
    %v142 = vadd.f32 %v135, %v141
    %v143 = vtanh.pop %v142
    %145 = vrot.lane.b32.xlu0 %v143, 32
    %v146 = vpop.permute.xlu0 %145
    %v148 = vmul.f32 %v134, %v146
    %149 = vrot.lane.b32.xlu0 %v134, 96
    %v150 = vpop.permute.xlu0 %149
    %v152 = vmul.f32 %v136, %v150
    %v153 = vadd.f32 %v148, %v152
    %155 = vrot.lane.b32.xlu0 %v153, 64
    %v156 = vpop.permute.xlu0 %155
    %s158 = scalar_lea.vmem %s2, 16
    %159 = vst.msk [vmem:[%s158] sm:$0xf] %vm50, %v156
    %s160 = scalar_lea.vmem %s0, 20
    %v161 = vld [vmem:[%s160] sm:$0xf]
    %v162 = vmul.f32 %v161, %v142
    %v163 = vsub.f32 1.0, %v161
    %165 = vrot.lane.b32.xlu0 %v161, 32
    %v166 = vpop.permute.xlu0 %165
    %v168 = vmul.f32 %v163, %v166
    %v169 = vadd.f32 %v162, %v168
    %v170 = vtanh.pop %v169
    %172 = vrot.lane.b32.xlu0 %v170, 32
    %v173 = vpop.permute.xlu0 %172
    %v175 = vmul.f32 %v161, %v173
    %176 = vrot.lane.b32.xlu0 %v161, 96
    %v177 = vpop.permute.xlu0 %176
    %v179 = vmul.f32 %v163, %v177
    %v180 = vadd.f32 %v175, %v179
    %182 = vrot.lane.b32.xlu0 %v180, 64
    %v183 = vpop.permute.xlu0 %182
    %s185 = scalar_lea.vmem %s2, 20
    %186 = vst.msk [vmem:[%s185] sm:$0xf] %vm50, %v183
    %s187 = scalar_lea.vmem %s0, 24
    %v188 = vld [vmem:[%s187] sm:$0xf]
    %v189 = vmul.f32 %v188, %v169
    %v190 = vsub.f32 1.0, %v188
    %192 = vrot.lane.b32.xlu0 %v188, 32
    %v193 = vpop.permute.xlu0 %192
    %v195 = vmul.f32 %v190, %v193
    %v196 = vadd.f32 %v189, %v195
    %v197 = vtanh.pop %v196
    %199 = vrot.lane.b32.xlu0 %v197, 32
    %v200 = vpop.permute.xlu0 %199
    %v202 = vmul.f32 %v188, %v200
    %203 = vrot.lane.b32.xlu0 %v188, 96
    %v204 = vpop.permute.xlu0 %203
    %v206 = vmul.f32 %v190, %v204
    %v207 = vadd.f32 %v202, %v206
    %209 = vrot.lane.b32.xlu0 %v207, 64
    %v210 = vpop.permute.xlu0 %209
    %s212 = scalar_lea.vmem %s2, 24
    %213 = vst.msk [vmem:[%s212] sm:$0xf] %vm50, %v210
    %s214 = scalar_lea.vmem %s0, 28
    %v215 = vld [vmem:[%s214] sm:$0xf]
    %v216 = vmul.f32 %v215, %v196
    %v217 = vsub.f32 1.0, %v215
    %219 = vrot.lane.b32.xlu0 %v215, 32
    %v220 = vpop.permute.xlu0 %219
    %v222 = vmul.f32 %v217, %v220
    %v223 = vadd.f32 %v216, %v222
    %v224 = vtanh.pop %v223
    %226 = vrot.lane.b32.xlu0 %v224, 32
    %v227 = vpop.permute.xlu0 %226
    %v229 = vmul.f32 %v215, %v227
    %230 = vrot.lane.b32.xlu0 %v215, 96
    %v231 = vpop.permute.xlu0 %230
    %v233 = vmul.f32 %v217, %v231
    %v234 = vadd.f32 %v229, %v233
    %236 = vrot.lane.b32.xlu0 %v234, 64
    %v237 = vpop.permute.xlu0 %236
    %s239 = scalar_lea.vmem %s2, 28
    %240 = vst.msk [vmem:[%s239] sm:$0xf] %vm50, %v237
    %242 = vrot.lane.b32.xlu0 %v223, 96
    %v243 = vpop.permute.xlu0 %242
    %245 = vst.msk [vmem:[#allocation2] sm:$0xf] %vm50, %v243
    // Predicated region
    $region14: #{sru_formula_cell_forward.5} parent=1 // pred_check
      %p246 = pneg %p14
    $region15: #{sru_formula_cell_forward.5} parent=1 // pred_check_branch
      %248 = sbr.rel (%p246) target = $region17
    $region16: #{sru_formula_cell_forward.5} parent=1 // pred_region
      %249 = vst.msk [vmem:[#allocation3] sm:$0xf] %vm50, %v243
    $region17: #{sru_formula_cell_forward.5} parent=1 // pred_fallthru
      _
    // Predicated region
    $region18: #{sru_formula_cell_forward.5} parent=1 // pred_check
      _
    $region19: #{sru_formula_cell_forward.5} parent=1 // pred_check_branch
      %251 = sbr.rel (0) target = $region21
    $region20: #{sru_formula_cell_forward.5} parent=1 // pred_region
      _
    $region21: #{sru_formula_cell_forward.5} parent=1 // pred_fallthru
      _
    // Predicated region
    $region22: #{sru_formula_cell_forward.5} parent=1 // pred_check
      _
    $region23: #{sru_formula_cell_forward.5} parent=1 // pred_check_branch
      %253 = sbr.rel (0) target = $region25
    $region24: #{sru_formula_cell_forward.5} parent=1 // pred_region
      %s255 = ssub.s32 64, 64
      %256 = vsyncadd [#allocation4], %s255
      %s258 = sshll.u32 [#allocation3], 4
      %s259 = int_to_ptr.vmem [resolvable:$true] %s258
      %261 = dma.vmem_to_hbm [thread:$0]  %s259, 64, %s3, [#allocation4]
    $region25: #{sru_formula_cell_forward.5} parent=1 // pred_fallthru
      _
    // Predicated region
    $region26: #{sru_formula_cell_forward.5} parent=1 // pred_check
      _
    $region27: #{sru_formula_cell_forward.5} parent=1 // pred_check_branch
      %263 = sbr.rel (0) target = $region29
    $region28: #{sru_formula_cell_forward.5} parent=1 // pred_region
      _
    $region29: #{sru_formula_cell_forward.5} parent=1 // pred_fallthru
      _
    // Predicated region
    $region30: #{sru_formula_cell_forward.5} parent=1 // pred_check
      _
    $region31: #{sru_formula_cell_forward.5} parent=1 // pred_check_branch
      %265 = sbr.rel (0) target = $region33
    $region32: #{sru_formula_cell_forward.5} parent=1 // pred_region
      %266 = dma.done [#allocation4], 64
    $region33: #{sru_formula_cell_forward.5} parent=1 // pred_fallthru
      _
    %267 = vsyncpa [#allocation4], 1

</llo_original>
